<compile_context>
chip_gen: v6e
topology: v6e:2x2x1
jax: 0.10.0
libtpu: 0.0.40
codegen_flags: <defaults>
</compile_context>

<pallas_src>
import functools

import jax
import jax.numpy as jnp
import numpy as np
from jax.experimental import pallas as pl
from jax.experimental.pallas import tpu as pltpu

CONST_RANK_DENOMINATOR = 2
BN_EPS = 1e-5


def _round_up(x, m):
    return (x + m - 1) // m * m


# ----------------------------------------------------------------------------
# Pallas kernels (single full-K tile, bf16 operands, f32 accumulation)
# ----------------------------------------------------------------------------
def _lowrank_mm_kernel(a_ref, wu_ref, wv_ref, s_ref, c_ref, o_ref, *, relu):
    """y = act(((a @ wu) @ wv) * scale + bias) -- fused low-rank conv pair."""
    u = jnp.dot(a_ref[...], wu_ref[...], preferred_element_type=jnp.float32)
    y = jnp.dot(u.astype(jnp.bfloat16), wv_ref[...],
                preferred_element_type=jnp.float32)
    y = y * s_ref[...] + c_ref[...]
    if relu:
        y = jnp.maximum(y, 0.0)
    o_ref[...] = y.astype(o_ref.dtype)


def _lowrank_mm_res_kernel(a_ref, wu_ref, wv_ref, s_ref, c_ref, r_ref, o_ref,
                           *, relu):
    """Same as above plus fused residual (shortcut) add before the ReLU."""
    u = jnp.dot(a_ref[...], wu_ref[...], preferred_element_type=jnp.float32)
    y = jnp.dot(u.astype(jnp.bfloat16), wv_ref[...],
                preferred_element_type=jnp.float32)
    y = y * s_ref[...] + c_ref[...] + r_ref[...]
    if relu:
        y = jnp.maximum(y, 0.0)
    o_ref[...] = y.astype(o_ref.dtype)


def _mm_bn_kernel(a_ref, b_ref, s_ref, c_ref, o_ref):
    """y = (a @ b) * scale + bias -- shortcut 1x1 conv + folded BN."""
    y = jnp.dot(a_ref[...], b_ref[...], preferred_element_type=jnp.float32)
    o_ref[...] = (y * s_ref[...] + c_ref[...]).astype(o_ref.dtype)


# ----------------------------------------------------------------------------
# Kernel wrappers
# ----------------------------------------------------------------------------
def _choose_tm(M):
    """Pick an M tile: >=2 parallel tiles when possible (v7x has 2 TCs)."""
    if M <= 64:
        return M, M
    tm = 64 if M <= 512 else 256
    return tm, _round_up(M, tm)


def _pad_rows(x, Mp):
    M = x.shape[0]
    return x if Mp == M else jnp.pad(x, ((0, Mp - M), (0, 0)))


def lowrank_matmul_bn_act(a, wu, wv, scale, bias, residual=None, relu=True,
                          out_dtype=jnp.float32):
    """act(((a @ wu) @ wv) * scale + bias [+ residual]); wu/wv are bf16."""
    M, K = a.shape
    R = wu.shape[1]
    N = wv.shape[1]
    tm, Mp = _choose_tm(M)

    a_b = _pad_rows(a.astype(jnp.bfloat16), Mp)
    s2 = scale.reshape(1, N).astype(jnp.float32)
    c2 = bias.reshape(1, N).astype(jnp.float32)

    in_specs = [
        pl.BlockSpec((tm, K), lambda i: (i, 0)),
        pl.BlockSpec((K, R), lambda i: (0, 0)),
        pl.BlockSpec((R, N), lambda i: (0, 0)),
        pl.BlockSpec((1, N), lambda i: (0, 0)),
        pl.BlockSpec((1, N), lambda i: (0, 0)),
    ]
    args = [a_b, wu, wv, s2, c2]
    if residual is not None:
        in_specs.append(pl.BlockSpec((tm, N), lambda i: (i, 0)))
        args.append(_pad_rows(residual.astype(jnp.float32), Mp))
        kern = functools.partial(_lowrank_mm_res_kernel, relu=relu)
    else:
        kern = functools.partial(_lowrank_mm_kernel, relu=relu)

    out = pl.pallas_call(
        kern,
        out_shape=jax.ShapeDtypeStruct((Mp, N), out_dtype),
        grid=(Mp // tm,),
        in_specs=in_specs,
        out_specs=pl.BlockSpec((tm, N), lambda i: (i, 0)),
        compiler_params=pltpu.CompilerParams(
            dimension_semantics=("parallel",)),
    )(*args)
    return out[:M] if Mp != M else out


def matmul_bn(a, b, scale, bias, out_dtype=jnp.float32):
    """(a @ b) * scale + bias; b is pre-transposed bf16 (shortcut conv)."""
    M, K = a.shape
    N = b.shape[1]
    tm, Mp = _choose_tm(M)
    a_b = _pad_rows(a.astype(jnp.bfloat16), Mp)
    s2 = scale.reshape(1, N).astype(jnp.float32)
    c2 = bias.reshape(1, N).astype(jnp.float32)

    out = pl.pallas_call(
        _mm_bn_kernel,
        out_shape=jax.ShapeDtypeStruct((Mp, N), out_dtype),
        grid=(Mp // tm,),
        in_specs=[pl.BlockSpec((tm, K), lambda i: (i, 0)),
                  pl.BlockSpec((K, N), lambda i: (0, 0)),
                  pl.BlockSpec((1, N), lambda i: (0, 0)),
                  pl.BlockSpec((1, N), lambda i: (0, 0))],
        out_specs=pl.BlockSpec((tm, N), lambda i: (i, 0)),
        compiler_params=pltpu.CompilerParams(
            dimension_semantics=("parallel",)),
    )(a_b, b, s2, c2)
    return out[:M] if Mp != M else out


# ----------------------------------------------------------------------------
# im2col glue (NHWC, column order (kh, kw, Cin))
# ----------------------------------------------------------------------------
def _im2col_nhwc(x, kh, kw, stride, pad):
    B, H, W, C = x.shape
    xp = jnp.pad(x, ((0, 0), (pad, pad), (pad, pad), (0, 0)))
    Ho = (H + 2 * pad - kh) // stride + 1
    Wo = (W + 2 * pad - kw) // stride + 1
    cols = []
    for i in range(kh):
        for j in range(kw):
            cols.append(xp[:, i:i + stride * Ho:stride,
                           j:j + stride * Wo:stride, :])
    col = jnp.concatenate(cols, axis=-1)          # [B, Ho, Wo, kh*kw*C]
    return col.reshape(B * Ho * Wo, kh * kw * C), (B, Ho, Wo)


# ----------------------------------------------------------------------------
# Parameters: raw (PyTorch layout) + one-time prepared (folded/transposed/bf16)
# ----------------------------------------------------------------------------
def init_raw_params(key, in_planes, planes, stride):
    r = planes // CONST_RANK_DENOMINATOR
    keys = iter(jax.random.split(key, 32))

    def conv_w(cout, cin, kh, kw):
        return (jax.random.normal(next(keys), (cout, cin, kh, kw), jnp.float32)
                / np.sqrt(cin * kh * kw))

    def bn_p(c):
        g = 1.0 + 0.1 * jax.random.normal(next(keys), (c,), jnp.float32)
        b = 0.1 * jax.random.normal(next(keys), (c,), jnp.float32)
        m = 0.1 * jax.random.normal(next(keys), (c,), jnp.float32)
        v = 1.0 + 0.1 * jnp.abs(jax.random.normal(next(keys), (c,), jnp.float32))
        return (g, b, m, v)

    raw = {
        "conv1_u": conv_w(r, in_planes, 3, 3),
        "conv1_v": conv_w(planes, r, 1, 1),
        "conv1_res_u": conv_w(r, in_planes, 3, 3),
        "conv1_res_v": conv_w(planes, r, 1, 1),
        "bn1": bn_p(planes),
        "conv2_u": conv_w(r, planes, 3, 3),
        "conv2_v": conv_w(planes, r, 1, 1),
        "conv2_res_u": conv_w(r, planes, 3, 3),
        "conv2_res_v": conv_w(planes, r, 1, 1),
        "bn2": bn_p(planes),
    }
    if stride != 1 or in_planes != planes:
        raw["sc_conv"] = conv_w(planes, in_planes, 1, 1)
        raw["sc_bn"] = bn_p(planes)
    return raw


def _bn_fold(p):
    g, b, m, v = p
    scale = g / jnp.sqrt(v + BN_EPS)
    return scale, b - m * scale


def _u_matrix(wu_a, wu_b):
    # concat both u branches along Cout, then (Cout,Cin,kh,kw)->[(kh,kw,Cin),2r]
    w = jnp.concatenate([wu_a, wu_b], axis=0)        # [2r, Cin, 3, 3]
    w = jnp.transpose(w, (2, 3, 1, 0))               # [kh, kw, Cin, 2r]
    return w.reshape(-1, w.shape[-1]).astype(jnp.bfloat16)


def _v_matrix(wv_a, wv_b):
    # conv_v(U_a) + conv_res_v(U_b) == [U_a | U_b] @ [Wv_a | Wv_b]^T
    planes, r = wv_a.shape[:2]
    w = jnp.concatenate([wv_a.reshape(planes, r), wv_b.reshape(planes, r)],
                        axis=1)                      # [planes, 2r]
    return jnp.transpose(w).astype(jnp.bfloat16)     # [2r, planes]


def prepare_params(raw):
    p = {
        "wu1": _u_matrix(raw["conv1_u"], raw["conv1_res_u"]),
        "wv1": _v_matrix(raw["conv1_v"], raw["conv1_res_v"]),
        "wu2": _u_matrix(raw["conv2_u"], raw["conv2_res_u"]),
        "wv2": _v_matrix(raw["conv2_v"], raw["conv2_res_v"]),
    }
    p["bn1_scale"], p["bn1_bias"] = _bn_fold(raw["bn1"])
    p["bn2_scale"], p["bn2_bias"] = _bn_fold(raw["bn2"])
    if "sc_conv" in raw:
        planes, cin = raw["sc_conv"].shape[:2]
        p["sc_w"] = jnp.transpose(
            raw["sc_conv"].reshape(planes, cin)).astype(jnp.bfloat16)
        p["sc_scale"], p["sc_bias"] = _bn_fold(raw["sc_bn"])
    return p


# ----------------------------------------------------------------------------
# Forward pass (matches LowRankBasicBlockLowRankResidual.forward, eval-mode BN)
# ----------------------------------------------------------------------------
def low_rank_block_forward(params, x_nchw, *, stride, planes):
    x = jnp.transpose(x_nchw, (0, 2, 3, 1))                  # NHWC

    # stage 1: conv1_v(conv1_u(x)) + conv1_res_v(conv1_res_u(x)) -> bn1 -> relu
    a1, (B, Ho, Wo) = _im2col_nhwc(x, 3, 3, stride, 1)
    y1 = lowrank_matmul_bn_act(a1, params["wu1"], params["wv1"],
                               params["bn1_scale"], params["bn1_bias"],
                               relu=True, out_dtype=jnp.bfloat16)
    y1 = y1.reshape(B, Ho, Wo, planes)

    # shortcut branch: 1x1 strided conv + BN, or identity
    if "sc_w" in params:
        xs = x[:, ::stride, ::stride, :][:, :Ho, :Wo, :]
        xs = xs.reshape(B * Ho * Wo, -1)
        sc = matmul_bn(xs, params["sc_w"], params["sc_scale"],
                       params["sc_bias"], out_dtype=jnp.float32)
    else:
        sc = x.reshape(B * Ho * Wo, planes).astype(jnp.float32)

    # stage 2: conv2 pair -> bn2 -> (+ shortcut) -> relu, all fused in epilogue
    a2, _ = _im2col_nhwc(y1, 3, 3, 1, 1)
    y2 = lowrank_matmul_bn_act(a2, params["wu2"], params["wv2"],
                               params["bn2_scale"], params["bn2_bias"],
                               residual=sc, relu=True, out_dtype=jnp.float32)
    return jnp.transpose(y2.reshape(B, Ho, Wo, planes), (0, 3, 1, 2))  # NCHW


# ----------------------------------------------------------------------------
# Pure-JAX reference (f32, lax.conv) for correctness check
# ----------------------------------------------------------------------------
def _conv_ref(x, w, stride, pad):
    return jax.lax.conv_general_dilated(
        x, w, window_strides=(stride, stride),
        padding=((pad, pad), (pad, pad)),
        dimension_numbers=("NCHW", "OIHW", "NCHW"))


def _bn_ref(y, p):
    g, b, m, v = p
    s = g / jnp.sqrt(v + BN_EPS)
    return y * s[None, :, None, None] + (b - m * s)[None, :, None, None]


def ref_forward(raw, x, stride):
    out = (_conv_ref(_conv_ref(x, raw["conv1_u"], stride, 1),
                     raw["conv1_v"], 1, 0)
           + _conv_ref(_conv_ref(x, raw["conv1_res_u"], stride, 1),
                       raw["conv1_res_v"], 1, 0))
    out = jax.nn.relu(_bn_ref(out, raw["bn1"]))
    out2 = (_conv_ref(_conv_ref(out, raw["conv2_u"], 1, 1),
                      raw["conv2_v"], 1, 0)
            + _conv_ref(_conv_ref(out, raw["conv2_res_u"], 1, 1),
                        raw["conv2_res_v"], 1, 0))
    out2 = _bn_ref(out2, raw["bn2"])
    if "sc_conv" in raw:
        sc = _bn_ref(_conv_ref(x, raw["sc_conv"], stride, 0), raw["sc_bn"])
    else:
        sc = x
    return jax.nn.relu(out2 + sc)


if __name__ == "__main__":
    key = jax.random.PRNGKey(0)
    kp, kx = jax.random.split(key)

    # Small shapes consistent with the module: in_planes=32 -> planes=64,
    # stride=2 (exercises the conv+BN shortcut), CIFAR-like 16x16 spatial.
    B, IN_PLANES, PLANES, STRIDE, H = 2, 32, 64, 2, 16

    raw = init_raw_params(kp, IN_PLANES, PLANES, STRIDE)
    params = prepare_params(raw)
    x = jax.random.normal(kx, (B, IN_PLANES, H, H), jnp.float32)

    fwd = jax.jit(functools.partial(low_rank_block_forward,
                                    stride=STRIDE, planes=PLANES))
    out = jax.block_until_ready(fwd(params, x))
    assert out.shape == (B, PLANES, H // STRIDE, H // STRIDE), out.shape

    ref = ref_forward(raw, x, STRIDE)
    rel_err = float(jnp.linalg.norm(out - ref) / (jnp.linalg.norm(ref) + 1e-6))
    assert rel_err < 3e-2, f"relative error too large: {rel_err}"
    print("KERNEL_OK")
</pallas_src>

<mosaic_0001>
module attributes {stable_mosaic.version = 11 : i64} {
  func.func @_lowrank_mm_kernel(%arg0: i32, %arg1: memref<64x288xbf16, #tpu.memory_space<vmem>>, %arg2: memref<288x64xbf16, #tpu.memory_space<vmem>>, %arg3: memref<64x64xbf16, #tpu.memory_space<vmem>>, %arg4: memref<1x64xf32, #tpu.memory_space<vmem>>, %arg5: memref<1x64xf32, #tpu.memory_space<vmem>>, %arg6: memref<64x64xbf16, #tpu.memory_space<vmem>>) attributes {dimension_semantics = [#tpu.dimension_semantics<parallel>], iteration_bounds = array<i64: 2>, scalar_prefetch = 0 : i64, scratch_operands = 0 : i64, tpu.core_type = #tpu.core_type<tc>, window_params = [{transform_indices = @transform_0, window_bounds = array<i64: 64, 288>}, {pipeline_mode = #tpu.pipeline_mode<synchronous>, transform_indices = @transform_1, window_bounds = array<i64: 288, 64>}, {pipeline_mode = #tpu.pipeline_mode<synchronous>, transform_indices = @transform_2, window_bounds = array<i64: 64, 64>}, {pipeline_mode = #tpu.pipeline_mode<synchronous>, transform_indices = @transform_3, window_bounds = array<i64: 1, 64>}, {pipeline_mode = #tpu.pipeline_mode<synchronous>, transform_indices = @transform_4, window_bounds = array<i64: 1, 64>}, {transform_indices = @transform_5, window_bounds = array<i64: 64, 64>}]} {
    %c0 = arith.constant 0 : index
    %c0_0 = arith.constant 0 : index
    %0 = vector.load %arg1[%c0, %c0_0] : memref<64x288xbf16, #tpu.memory_space<vmem>>, vector<64x288xbf16>
    %c0_1 = arith.constant 0 : index
    %c0_2 = arith.constant 0 : index
    %1 = vector.load %arg2[%c0_1, %c0_2] : memref<288x64xbf16, #tpu.memory_space<vmem>>, vector<288x64xbf16>
    %cst = arith.constant dense<0.000000e+00> : vector<64x64xf32>
    %2 = tpu.matmul %0, %1, %cst {dimension_numbers = #tpu.dot_dimension_numbers<[1], [0], [0], [1], [0, 0, 1, 1], [], []>} : vector<64x288xbf16>, vector<288x64xbf16>, vector<64x64xf32> -> vector<64x64xf32>
    %3 = arith.truncf %2 : vector<64x64xf32> to vector<64x64xbf16>
    %c0_3 = arith.constant 0 : index
    %c0_4 = arith.constant 0 : index
    %4 = vector.load %arg3[%c0_3, %c0_4] : memref<64x64xbf16, #tpu.memory_space<vmem>>, vector<64x64xbf16>
    %cst_5 = arith.constant dense<0.000000e+00> : vector<64x64xf32>
    %5 = tpu.matmul %3, %4, %cst_5 {dimension_numbers = #tpu.dot_dimension_numbers<[1], [0], [0], [1], [0, 0, 1, 1], [], []>} : vector<64x64xbf16>, vector<64x64xbf16>, vector<64x64xf32> -> vector<64x64xf32>
    %c0_6 = arith.constant 0 : index
    %c0_7 = arith.constant 0 : index
    %6 = vector.load %arg4[%c0_6, %c0_7] : memref<1x64xf32, #tpu.memory_space<vmem>>, vector<1x64xf32>
    %7 = vector.broadcast %6 : vector<1x64xf32> to vector<64x64xf32>
    %8 = arith.mulf %5, %7 : vector<64x64xf32>
    %c0_8 = arith.constant 0 : index
    %c0_9 = arith.constant 0 : index
    %9 = vector.load %arg5[%c0_8, %c0_9] : memref<1x64xf32, #tpu.memory_space<vmem>>, vector<1x64xf32>
    %10 = vector.broadcast %9 : vector<1x64xf32> to vector<64x64xf32>
    %11 = arith.addf %8, %10 : vector<64x64xf32>
    %cst_10 = arith.constant 0.000000e+00 : f32
    %12 = vector.broadcast %cst_10 : f32 to vector<64x64xf32>
    %13 = arith.maximumf %11, %12 : vector<64x64xf32>
    %14 = arith.truncf %13 : vector<64x64xf32> to vector<64x64xbf16>
    %c0_11 = arith.constant 0 : index
    %c0_12 = arith.constant 0 : index
    %15 = vector.load %arg6[%c0_11, %c0_12] : memref<64x64xbf16, #tpu.memory_space<vmem>>, vector<64x64xbf16>
    tpu.vector_store %arg6[%c0_11, %c0_12], %14 {strides = array<i32>} : memref<64x64xbf16, #tpu.memory_space<vmem>>, vector<64x64xbf16>,
    return
  }
  func.func @transform_0(%arg0: i32) -> (i32, i32) {
    %c0_i32 = arith.constant 0 : i32
    %c0_i32_0 = arith.constant 0 : i32
    return %arg0, %c0_i32 : i32, i32
  }
  func.func @transform_1(%arg0: i32) -> (i32, i32) {
    %c0_i32 = arith.constant 0 : i32
    %c0_i32_0 = arith.constant 0 : i32
    %c0_i32_1 = arith.constant 0 : i32
    return %c0_i32, %c0_i32_0 : i32, i32
  }
  func.func @transform_2(%arg0: i32) -> (i32, i32) {
    %c0_i32 = arith.constant 0 : i32
    %c0_i32_0 = arith.constant 0 : i32
    %c0_i32_1 = arith.constant 0 : i32
    return %c0_i32, %c0_i32_0 : i32, i32
  }
  func.func @transform_3(%arg0: i32) -> (i32, i32) {
    %c0_i32 = arith.constant 0 : i32
    %c0_i32_0 = arith.constant 0 : i32
    %c0_i32_1 = arith.constant 0 : i32
    return %c0_i32, %c0_i32_0 : i32, i32
  }
  func.func @transform_4(%arg0: i32) -> (i32, i32) {
    %c0_i32 = arith.constant 0 : i32
    %c0_i32_0 = arith.constant 0 : i32
    %c0_i32_1 = arith.constant 0 : i32
    return %c0_i32, %c0_i32_0 : i32, i32
  }
  func.func @transform_5(%arg0: i32) -> (i32, i32) {
    %c0_i32 = arith.constant 0 : i32
    %c0_i32_0 = arith.constant 0 : i32
    return %arg0, %c0_i32 : i32, i32
  }
}

module attributes {stable_mosaic.version = 11 : i64} {
  func.func @_mm_bn_kernel(%arg0: i32, %arg1: memref<64x32xbf16, #tpu.memory_space<vmem>>, %arg2: memref<32x64xbf16, #tpu.memory_space<vmem>>, %arg3: memref<1x64xf32, #tpu.memory_space<vmem>>, %arg4: memref<1x64xf32, #tpu.memory_space<vmem>>, %arg5: memref<64x64xf32, #tpu.memory_space<vmem>>) attributes {dimension_semantics = [#tpu.dimension_semantics<parallel>], iteration_bounds = array<i64: 2>, scalar_prefetch = 0 : i64, scratch_operands = 0 : i64, tpu.core_type = #tpu.core_type<tc>, window_params = [{transform_indices = @transform_0, window_bounds = array<i64: 64, 32>}, {pipeline_mode = #tpu.pipeline_mode<synchronous>, transform_indices = @transform_1, window_bounds = array<i64: 32, 64>}, {pipeline_mode = #tpu.pipeline_mode<synchronous>, transform_indices = @transform_2, window_bounds = array<i64: 1, 64>}, {pipeline_mode = #tpu.pipeline_mode<synchronous>, transform_indices = @transform_3, window_bounds = array<i64: 1, 64>}, {transform_indices = @transform_4, window_bounds = array<i64: 64, 64>}]} {
    %c0 = arith.constant 0 : index
    %c0_0 = arith.constant 0 : index
    %0 = vector.load %arg1[%c0, %c0_0] : memref<64x32xbf16, #tpu.memory_space<vmem>>, vector<64x32xbf16>
    %c0_1 = arith.constant 0 : index
    %c0_2 = arith.constant 0 : index
    %1 = vector.load %arg2[%c0_1, %c0_2] : memref<32x64xbf16, #tpu.memory_space<vmem>>, vector<32x64xbf16>
    %cst = arith.constant dense<0.000000e+00> : vector<64x64xf32>
    %2 = tpu.matmul %0, %1, %cst {dimension_numbers = #tpu.dot_dimension_numbers<[1], [0], [0], [1], [0, 0, 1, 1], [], []>} : vector<64x32xbf16>, vector<32x64xbf16>, vector<64x64xf32> -> vector<64x64xf32>
    %c0_3 = arith.constant 0 : index
    %c0_4 = arith.constant 0 : index
    %3 = vector.load %arg3[%c0_3, %c0_4] : memref<1x64xf32, #tpu.memory_space<vmem>>, vector<1x64xf32>
    %4 = vector.broadcast %3 : vector<1x64xf32> to vector<64x64xf32>
    %5 = arith.mulf %2, %4 : vector<64x64xf32>
    %c0_5 = arith.constant 0 : index
    %c0_6 = arith.constant 0 : index
    %6 = vector.load %arg4[%c0_5, %c0_6] : memref<1x64xf32, #tpu.memory_space<vmem>>, vector<1x64xf32>
    %7 = vector.broadcast %6 : vector<1x64xf32> to vector<64x64xf32>
    %8 = arith.addf %5, %7 : vector<64x64xf32>
    %c0_7 = arith.constant 0 : index
    %c0_8 = arith.constant 0 : index
    %9 = vector.load %arg5[%c0_7, %c0_8] : memref<64x64xf32, #tpu.memory_space<vmem>>, vector<64x64xf32>
    tpu.vector_store %arg5[%c0_7, %c0_8], %8 {strides = array<i32>} : memref<64x64xf32, #tpu.memory_space<vmem>>, vector<64x64xf32>,
    return
  }
  func.func @transform_0(%arg0: i32) -> (i32, i32) {
    %c0_i32 = arith.constant 0 : i32
    %c0_i32_0 = arith.constant 0 : i32
    return %arg0, %c0_i32 : i32, i32
  }
  func.func @transform_1(%arg0: i32) -> (i32, i32) {
    %c0_i32 = arith.constant 0 : i32
    %c0_i32_0 = arith.constant 0 : i32
    %c0_i32_1 = arith.constant 0 : i32
    return %c0_i32, %c0_i32_0 : i32, i32
  }
  func.func @transform_2(%arg0: i32) -> (i32, i32) {
    %c0_i32 = arith.constant 0 : i32
    %c0_i32_0 = arith.constant 0 : i32
    %c0_i32_1 = arith.constant 0 : i32
    return %c0_i32, %c0_i32_0 : i32, i32
  }
  func.func @transform_3(%arg0: i32) -> (i32, i32) {
    %c0_i32 = arith.constant 0 : i32
    %c0_i32_0 = arith.constant 0 : i32
    %c0_i32_1 = arith.constant 0 : i32
    return %c0_i32, %c0_i32_0 : i32, i32
  }
  func.func @transform_4(%arg0: i32) -> (i32, i32) {
    %c0_i32 = arith.constant 0 : i32
    %c0_i32_0 = arith.constant 0 : i32
    return %arg0, %c0_i32 : i32, i32
  }
}

module attributes {stable_mosaic.version = 11 : i64} {
  func.func @_lowrank_mm_res_kernel(%arg0: i32, %arg1: memref<64x576xbf16, #tpu.memory_space<vmem>>, %arg2: memref<576x64xbf16, #tpu.memory_space<vmem>>, %arg3: memref<64x64xbf16, #tpu.memory_space<vmem>>, %arg4: memref<1x64xf32, #tpu.memory_space<vmem>>, %arg5: memref<1x64xf32, #tpu.memory_space<vmem>>, %arg6: memref<64x64xf32, #tpu.memory_space<vmem>>, %arg7: memref<64x64xf32, #tpu.memory_space<vmem>>) attributes {dimension_semantics = [#tpu.dimension_semantics<parallel>], iteration_bounds = array<i64: 2>, scalar_prefetch = 0 : i64, scratch_operands = 0 : i64, tpu.core_type = #tpu.core_type<tc>, window_params = [{transform_indices = @transform_0, window_bounds = array<i64: 64, 576>}, {pipeline_mode = #tpu.pipeline_mode<synchronous>, transform_indices = @transform_1, window_bounds = array<i64: 576, 64>}, {pipeline_mode = #tpu.pipeline_mode<synchronous>, transform_indices = @transform_2, window_bounds = array<i64: 64, 64>}, {pipeline_mode = #tpu.pipeline_mode<synchronous>, transform_indices = @transform_3, window_bounds = array<i64: 1, 64>}, {pipeline_mode = #tpu.pipeline_mode<synchronous>, transform_indices = @transform_4, window_bounds = array<i64: 1, 64>}, {transform_indices = @transform_5, window_bounds = array<i64: 64, 64>}, {transform_indices = @transform_6, window_bounds = array<i64: 64, 64>}]} {
    %c0 = arith.constant 0 : index
    %c0_0 = arith.constant 0 : index
    %0 = vector.load %arg1[%c0, %c0_0] : memref<64x576xbf16, #tpu.memory_space<vmem>>, vector<64x576xbf16>
    %c0_1 = arith.constant 0 : index
    %c0_2 = arith.constant 0 : index
    %1 = vector.load %arg2[%c0_1, %c0_2] : memref<576x64xbf16, #tpu.memory_space<vmem>>, vector<576x64xbf16>
    %cst = arith.constant dense<0.000000e+00> : vector<64x64xf32>
    %2 = tpu.matmul %0, %1, %cst {dimension_numbers = #tpu.dot_dimension_numbers<[1], [0], [0], [1], [0, 0, 1, 1], [], []>} : vector<64x576xbf16>, vector<576x64xbf16>, vector<64x64xf32> -> vector<64x64xf32>
    %3 = arith.truncf %2 : vector<64x64xf32> to vector<64x64xbf16>
    %c0_3 = arith.constant 0 : index
    %c0_4 = arith.constant 0 : index
    %4 = vector.load %arg3[%c0_3, %c0_4] : memref<64x64xbf16, #tpu.memory_space<vmem>>, vector<64x64xbf16>
    %cst_5 = arith.constant dense<0.000000e+00> : vector<64x64xf32>
    %5 = tpu.matmul %3, %4, %cst_5 {dimension_numbers = #tpu.dot_dimension_numbers<[1], [0], [0], [1], [0, 0, 1, 1], [], []>} : vector<64x64xbf16>, vector<64x64xbf16>, vector<64x64xf32> -> vector<64x64xf32>
    %c0_6 = arith.constant 0 : index
    %c0_7 = arith.constant 0 : index
    %6 = vector.load %arg4[%c0_6, %c0_7] : memref<1x64xf32, #tpu.memory_space<vmem>>, vector<1x64xf32>
    %7 = vector.broadcast %6 : vector<1x64xf32> to vector<64x64xf32>
    %8 = arith.mulf %5, %7 : vector<64x64xf32>
    %c0_8 = arith.constant 0 : index
    %c0_9 = arith.constant 0 : index
    %9 = vector.load %arg5[%c0_8, %c0_9] : memref<1x64xf32, #tpu.memory_space<vmem>>, vector<1x64xf32>
    %10 = vector.broadcast %9 : vector<1x64xf32> to vector<64x64xf32>
    %11 = arith.addf %8, %10 : vector<64x64xf32>
    %c0_10 = arith.constant 0 : index
    %c0_11 = arith.constant 0 : index
    %12 = vector.load %arg6[%c0_10, %c0_11] : memref<64x64xf32, #tpu.memory_space<vmem>>, vector<64x64xf32>
    %13 = arith.addf %11, %12 : vector<64x64xf32>
    %cst_12 = arith.constant 0.000000e+00 : f32
    %14 = vector.broadcast %cst_12 : f32 to vector<64x64xf32>
    %15 = arith.maximumf %13, %14 : vector<64x64xf32>
    %c0_13 = arith.constant 0 : index
    %c0_14 = arith.constant 0 : index
    %16 = vector.load %arg7[%c0_13, %c0_14] : memref<64x64xf32, #tpu.memory_space<vmem>>, vector<64x64xf32>
    tpu.vector_store %arg7[%c0_13, %c0_14], %15 {strides = array<i32>} : memref<64x64xf32, #tpu.memory_space<vmem>>, vector<64x64xf32>,
    return
  }
  func.func @transform_0(%arg0: i32) -> (i32, i32) {
    %c0_i32 = arith.constant 0 : i32
    %c0_i32_0 = arith.constant 0 : i32
    return %arg0, %c0_i32 : i32, i32
  }
  func.func @transform_1(%arg0: i32) -> (i32, i32) {
    %c0_i32 = arith.constant 0 : i32
    %c0_i32_0 = arith.constant 0 : i32
    %c0_i32_1 = arith.constant 0 : i32
    return %c0_i32, %c0_i32_0 : i32, i32
  }
  func.func @transform_2(%arg0: i32) -> (i32, i32) {
    %c0_i32 = arith.constant 0 : i32
    %c0_i32_0 = arith.constant 0 : i32
    %c0_i32_1 = arith.constant 0 : i32
    return %c0_i32, %c0_i32_0 : i32, i32
  }
  func.func @transform_3(%arg0: i32) -> (i32, i32) {
    %c0_i32 = arith.constant 0 : i32
    %c0_i32_0 = arith.constant 0 : i32
    %c0_i32_1 = arith.constant 0 : i32
    return %c0_i32, %c0_i32_0 : i32, i32
  }
  func.func @transform_4(%arg0: i32) -> (i32, i32) {
    %c0_i32 = arith.constant 0 : i32
    %c0_i32_0 = arith.constant 0 : i32
    %c0_i32_1 = arith.constant 0 : i32
    return %c0_i32, %c0_i32_0 : i32, i32
  }
  func.func @transform_5(%arg0: i32) -> (i32, i32) {
    %c0_i32 = arith.constant 0 : i32
    %c0_i32_0 = arith.constant 0 : i32
    return %arg0, %c0_i32 : i32, i32
  }
  func.func @transform_6(%arg0: i32) -> (i32, i32) {
    %c0_i32 = arith.constant 0 : i32
    %c0_i32_0 = arith.constant 0 : i32
    return %arg0, %c0_i32 : i32, i32
  }
}

</mosaic_0001>

<llo_original>
// kernel: low_rank_block_forward.4
$region0: #{low_rank_block_forward.4}
  #allocation0 [shape = 'u32[]', space=smem, size = 0x4, offset = 0x4, fixed_abs, tag = 'smem constant byte address 0x4 - core index']
  #allocation1 [shape = 'u32[144,128]{1,0:T(1,128)}', space=vmem, size = 0x12000, scoped, tag = 'internal scratch']
  %s0 = inlined_call_operand.vmem [shape: bf16[128,32], index: 0, kind: input, shape index: {}]
  %s1 = inlined_call_operand.vmem [shape: bf16[32,64], index: 1, kind: input, shape index: {}]
  %s2 = inlined_call_operand.vmem [shape: f32[1,64], index: 2, kind: input, shape index: {}]
  %s3 = inlined_call_operand.vmem [shape: f32[1,64], index: 3, kind: input, shape index: {}]
  %s4 = inlined_call_operand.vmem [shape: f32[128,64], index: 4, kind: output, shape index: {}]
  %s5 = sld [smem:[#allocation0]]
  $region49: #{low_rank_block_forward.4} parent=0
    _
  %s7 = ssub.s32 1, %s5
  %s8 = scalar_select 0, %s7, %s5
  loop: start=0, step=1, limit=4
  $region2: #{low_rank_block_forward.4} parent=0 // loop_pre_header
    _
  $region3: #{low_rank_block_forward.4} parent=0 // loop_header
    %s10 = sphi 0, %s14
    %p11 = scmp.ge.s32.totalorder %s10, 4
    %s20 = sphi 0, %s22
    %s23 = sphi 0, %s20
    %s24 = sphi 0, %s23
    %s40 = sphi 0, %s24
    %s44 = sphi 0, %s44
    %s46 = sphi 0, %s44
    %s47 = sphi 0, %s46
    %s61 = sphi 0, %s47
    %s65 = sphi 0, %s65
    %s67 = sphi 0, %s65
    %s68 = sphi 0, %s67
    %s82 = sphi 0, %s68
    %s86 = sphi 0, %s86
    %s88 = sphi 0, %s86
    %s89 = sphi 0, %s88
    %s103 = sphi 0, %s89
    %s109 = sphi 0, %s111
    %s112 = sphi 0, %s109
    %s113 = sphi 0, %s112
    %s129 = sphi 0, %s113
  $region4: #{low_rank_block_forward.4} parent=0 // loop_header_branch
    %13 = sbr.rel (%p11) target = $region8
  $region5: #{low_rank_block_forward.4} parent=0 // loop_body
    %s15 = ssub.s32 %s10, 1
    %s16 = ssub.s32 %s10, 2
    %s17 = sadd.s32 %s10, 1
    %s18 = ssub.s32 %s10, %s17
    %p19 = scmp.eq.s32.totalorder %s18, 0
    %s21 = sadd.s32 %s20, 1
    %s22 = scalar_select %p19, %s20, %s21
    %p25 = pneg %p19
    %p26 = scmp.eq.s32.totalorder %s10, 1
    %p27 = por %p25, %p26
    %p28 = scmp.ne.s32.totalorder %s20, %s23
    %p29 = scmp.eq.s32.totalorder %s10, 0
    %p30 = por %p28, %p29
    %p31 = scmp.ne.s32.totalorder %s20, %s23
    %p32 = scmp.eq.s32.totalorder %s15, 1
    %p33 = por %p31, %p32
    %p34 = scmp.ne.s32.totalorder %s23, %s24
    %p35 = scmp.eq.s32.totalorder %s15, 0
    %p36 = por %p34, %p35
    %p37 = scmp.ne.s32.totalorder %s23, %s24
    %p38 = scmp.eq.s32.totalorder %s16, 1
    %p39 = por %p37, %p38
    %p41 = scmp.ne.s32.totalorder %s24, %s40
    %p42 = scmp.eq.s32.totalorder %s16, 0
    %p43 = por %p41, %p42
    %s45 = sadd.s32 %s44, 1
    %p48 = scmp.eq.s32.totalorder %s10, 1
    %p49 = scmp.ne.s32.totalorder %s44, %s46
    %p50 = scmp.eq.s32.totalorder %s10, 0
    %p51 = por %p49, %p50
    %p52 = scmp.ne.s32.totalorder %s44, %s46
    %p53 = scmp.eq.s32.totalorder %s15, 1
    %p54 = por %p52, %p53
    %p55 = scmp.ne.s32.totalorder %s46, %s47
    %p56 = scmp.eq.s32.totalorder %s15, 0
    %p57 = por %p55, %p56
    %p58 = scmp.ne.s32.totalorder %s46, %s47
    %p59 = scmp.eq.s32.totalorder %s16, 1
    %p60 = por %p58, %p59
    %p62 = scmp.ne.s32.totalorder %s47, %s61
    %p63 = scmp.eq.s32.totalorder %s16, 0
    %p64 = por %p62, %p63
    %s66 = sadd.s32 %s65, 1
    %p69 = scmp.eq.s32.totalorder %s10, 1
    %p70 = scmp.ne.s32.totalorder %s65, %s67
    %p71 = scmp.eq.s32.totalorder %s10, 0
    %p72 = por %p70, %p71
    %p73 = scmp.ne.s32.totalorder %s65, %s67
    %p74 = scmp.eq.s32.totalorder %s15, 1
    %p75 = por %p73, %p74
    %p76 = scmp.ne.s32.totalorder %s67, %s68
    %p77 = scmp.eq.s32.totalorder %s15, 0
    %p78 = por %p76, %p77
    %p79 = scmp.ne.s32.totalorder %s67, %s68
    %p80 = scmp.eq.s32.totalorder %s16, 1
    %p81 = por %p79, %p80
    %p83 = scmp.ne.s32.totalorder %s68, %s82
    %p84 = scmp.eq.s32.totalorder %s16, 0
    %p85 = por %p83, %p84
    %s87 = sadd.s32 %s86, 1
    %p90 = scmp.eq.s32.totalorder %s10, 1
    %p91 = scmp.ne.s32.totalorder %s86, %s88
    %p92 = scmp.eq.s32.totalorder %s10, 0
    %p93 = por %p91, %p92
    %p94 = scmp.ne.s32.totalorder %s86, %s88
    %p95 = scmp.eq.s32.totalorder %s15, 1
    %p96 = por %p94, %p95
    %p97 = scmp.ne.s32.totalorder %s88, %s89
    %p98 = scmp.eq.s32.totalorder %s15, 0
    %p99 = por %p97, %p98
    %p100 = scmp.ne.s32.totalorder %s88, %s89
    %p101 = scmp.eq.s32.totalorder %s16, 1
    %p102 = por %p100, %p101
    %p104 = scmp.ne.s32.totalorder %s89, %s103
    %p105 = scmp.eq.s32.totalorder %s16, 0
    %p106 = por %p104, %p105
    %s107 = ssub.s32 %s10, %s17
    %p108 = scmp.eq.s32.totalorder %s107, 0
    %s110 = sadd.s32 %s109, 1
    %s111 = scalar_select %p108, %s109, %s110
    %p114 = pneg %p108
    %p115 = scmp.eq.s32.totalorder %s10, 1
    %p116 = por %p114, %p115
    %p117 = scmp.ne.s32.totalorder %s109, %s112
    %p118 = scmp.eq.s32.totalorder %s10, 0
    %p119 = por %p117, %p118
    %p120 = scmp.ne.s32.totalorder %s109, %s112
    %p121 = scmp.eq.s32.totalorder %s15, 1
    %p122 = por %p120, %p121
    %p123 = scmp.ne.s32.totalorder %s112, %s113
    %p124 = scmp.eq.s32.totalorder %s15, 0
    %p125 = por %p123, %p124
    %p126 = scmp.ne.s32.totalorder %s112, %s113
    %p127 = scmp.eq.s32.totalorder %s16, 1
    %p128 = por %p126, %p127
    %p130 = scmp.ne.s32.totalorder %s113, %s129
    %p131 = scmp.eq.s32.totalorder %s16, 0
    %p132 = por %p130, %p131
    %p133 = scmp.le.s32.totalorder 1, %s10
    %p134 = scmp.lt.s32.totalorder %s10, 3
    %p135 = pnand %p133, %p134
    %p136 = pneg %p135
    // Predicated region
    $region9: #{low_rank_block_forward.4} parent=5 // pred_check
      _
    $region10: #{low_rank_block_forward.4} parent=5 // pred_check_branch
      %138 = sbr.rel (%p135) target = $region12
    $region11: #{low_rank_block_forward.4} parent=5 // pred_region
      %s139 = ssub.s32 %s10, 1
      // Predicated region
      $region13: #{low_rank_block_forward.4} parent=11 // pred_check
        %p140 = pneg %p57
      $region14: #{low_rank_block_forward.4} parent=11 // pred_check_branch
        %142 = sbr.rel (%p140) target = $region16
      $region15: #{low_rank_block_forward.4} parent=11 // pred_region
        _
      $region16: #{low_rank_block_forward.4} parent=11 // pred_fallthru
        _
      // Predicated region
      $region17: #{low_rank_block_forward.4} parent=11 // pred_check
        %p143 = pneg %p78
      $region18: #{low_rank_block_forward.4} parent=11 // pred_check_branch
        %145 = sbr.rel (%p143) target = $region20
      $region19: #{low_rank_block_forward.4} parent=11 // pred_region
        _
      $region20: #{low_rank_block_forward.4} parent=11 // pred_fallthru
        _
      // Predicated region
      $region21: #{low_rank_block_forward.4} parent=11 // pred_check
        %p146 = pneg %p99
      $region22: #{low_rank_block_forward.4} parent=11 // pred_check_branch
        %148 = sbr.rel (%p146) target = $region24
      $region23: #{low_rank_block_forward.4} parent=11 // pred_region
        _
      $region24: #{low_rank_block_forward.4} parent=11 // pred_fallthru
        _
    $region12: #{low_rank_block_forward.4} parent=5 // pred_fallthru
      _
    %p149 = scmp.lt.s32.totalorder %s10, 2
    // Predicated region
    $region25: #{low_rank_block_forward.4} parent=5 // pred_check
      %p150 = pneg %p149
    $region26: #{low_rank_block_forward.4} parent=5 // pred_check_branch
      %152 = sbr.rel (%p150) target = $region28
    $region27: #{low_rank_block_forward.4} parent=5 // pred_region
      // Predicated region
      $region29: #{low_rank_block_forward.4} parent=27 // pred_check
        %p153 = pneg %p30
      $region30: #{low_rank_block_forward.4} parent=27 // pred_check_branch
        %155 = sbr.rel (%p153) target = $region32
      $region31: #{low_rank_block_forward.4} parent=27 // pred_region
        %s156 = smul.u32 8, %s10
        %p157 = scmp.lt.s32.totalorder %s156, 15
        %s158 = scalar_select %p157, %s156, 15
        %s159 = smul.addr %s158, 4
        %s160 = scalar_lea.vmem %s0, %s159
        %s161 = smul.u32 8, %s10
      $region32: #{low_rank_block_forward.4} parent=27 // pred_fallthru
        _
    $region28: #{low_rank_block_forward.4} parent=5 // pred_fallthru
      _
    %p162 = scmp.le.s32.totalorder 1, %s10
    %p163 = scmp.lt.s32.totalorder %s10, 3
    %p164 = pnand %p162, %p163
    %p165 = pneg %p164
    // Predicated region
    $region33: #{low_rank_block_forward.4} parent=5 // pred_check
      _
    $region34: #{low_rank_block_forward.4} parent=5 // pred_check_branch
      %167 = sbr.rel (%p164) target = $region36
    $region35: #{low_rank_block_forward.4} parent=5 // pred_region
      %s168 = ssub.s32 %s10, 1
      %s169 = smul.u32 8, %s15
      %p170 = scmp.lt.s32.totalorder %s169, 15
      %s171 = scalar_select %p170, %s169, 15
      %s172 = smul.addr %s171, 4
      %s173 = scalar_lea.vmem %s0, %s172
      %p174 = pneg %p36
      %p175 = pneg %p33
      %p176 = pneg %p57
      %p177 = pneg %p54
      %p178 = pneg %p78
      %p179 = pneg %p75
      %p180 = pneg %p99
      %p181 = pneg %p96
      %p182 = pneg %p125
      %p183 = pneg %p122
      %s184 = smul.u32 8, %s15
      %p185 = scmp.lt.s32.totalorder %s184, 15
      %s186 = scalar_select %p185, %s184, 15
      %s187 = smul.addr %s186, 8
      %s188 = scalar_lea.vmem %s4, %s187
      %s189 = smul.u32 8, %s15
      %p190 = scmp.lt.s32.totalorder %s189, 15
      %s191 = scalar_select %p190, %s189, 15
      %s192 = smul.addr %s191, 4
      %s193 = scalar_lea.vmem %s0, %s192
      %s194 = smul.u32 8, %s15
      %s195 = smul.u32 8, %s15
      %p196 = scmp.lt.s32.totalorder %s195, 15
      %s197 = scalar_select %p196, %s195, 15
      %s198 = smul.addr %s197, 8
      %s199 = scalar_lea.vmem %s4, %s198
      %s200 = smul.u32 8, %s15
      %v202 = vld [vmem:[%s193] sm:$0xf]
      %v203 = vld [vmem:[%s193 + $0x4] sm:$0xf]
      %v204 = vld [vmem:[%s193 + $0x8] sm:$0xf]
      %v205 = vld [vmem:[%s193 + $0xc] sm:$0xf]
      %v206 = vld [vmem:[%s193 + $0x10] sm:$0xf]
      %v207 = vld [vmem:[%s193 + $0x14] sm:$0xf]
      %v208 = vld [vmem:[%s193 + $0x18] sm:$0xf]
      %v209 = vld [vmem:[%s193 + $0x1c] sm:$0xf]
      %v210 = vld [vmem:[%s1] sm:$0xf]
      %v211 = vld [vmem:[%s1 + $0x4] sm:$0xf]
      %v212 = vld [vmem:[%s1 + $0x8] sm:$0xf]
      %v213 = vld [vmem:[%s1 + $0xc] sm:$0xf]
      %v222 = vunpack.c.l.b16 %v202
      %v223 = vunpack.c.l.b16 %v203
      %v224 = vunpack.c.l.b16 %v204
      %v225 = vunpack.c.l.b16 %v205
      %v226 = vunpack.c.l.b16 %v206
      %v227 = vunpack.c.l.b16 %v207
      %v228 = vunpack.c.l.b16 %v208
      %v229 = vunpack.c.l.b16 %v209
      %v230 = vpack.c.b16 %v223, %v222
      %v231 = vpack.c.b16 %v225, %v224
      %v232 = vpack.c.b16 %v227, %v226
      %v233 = vpack.c.b16 %v229, %v228
      %v238 = vunpack.c.l.b16 %v210
      %v239 = vunpack.c.l.b16 %v211
      %v240 = vunpack.c.l.b16 %v212
      %v241 = vunpack.c.l.b16 %v213
      %v242 = vpack.c.b16 %v239, %v238
      %v243 = vpack.c.b16 %v241, %v240
      %vm246 = vcmask 261120
      %v248 = vsel %vm246, %v230, 0
      %v251 = vsel %vm246, %v231, 0
      %v254 = vsel %vm246, %v232, 0
      %v257 = vsel %vm246, %v233, 0
      %259 = vmatprep.subr.bf16.mxu0 0
      %260 = vmatpush1.bf16.msra.mxu0 0
      %261 = vmatprep.subr.bf16.mxu0 0
      %262 = vmatpush1.bf16.msra.mxu0 0
      %263 = vmatprep.subr.bf16.mxu0 0
      %264 = vmatpush1.bf16.msra.mxu0 0
      %265 = vmatprep.subr.bf16.mxu0 0
      %266 = vmatpush1.bf16.msra.mxu0 0
      %267 = vmatprep.subr.bf16.mxu0 0
      %268 = vmatpush1.bf16.msra.mxu0 0
      %269 = vmatprep.subr.bf16.mxu0 0
      %270 = vmatpush1.bf16.msra.mxu0 0
      %271 = vmatprep.subr.bf16.mxu0 0
      %272 = vmatpush1.bf16.msra.mxu0 %v243
      %273 = vmatprep.subr.bf16.mxu0 0
      %274 = vmatpush1.bf16.msra.mxu0 %v242
      %275 = vmatprep.subr.bf16.mxu0 0
      %276 = vmatpush2.bf16.msra.mxu0 0
      %277 = vmatprep.subr.bf16.mxu0 0
      %278 = vmatpush2.bf16.msra.mxu0 0
      %279 = vmatprep.subr.bf16.mxu0 0
      %280 = vmatpush2.bf16.msra.mxu0 0
      %281 = vmatprep.subr.bf16.mxu0 0
      %282 = vmatpush2.bf16.msra.mxu0 0
      %283 = vmatprep.subr.bf16.mxu0 0
      %284 = vmatpush2.bf16.msra.mxu0 0
      %285 = vmatprep.subr.bf16.mxu0 0
      %286 = vmatpush2.bf16.msra.mxu0 0
      %287 = vmatprep.subr.bf16.mxu0 0
      %288 = vmatpush2.bf16.msra.mxu0 0
      %289 = vmatprep.subr.bf16.mxu0 0
      %290 = vmatpush2.bf16.msra.mxu0 0
      %291 = vmatprep.mubr.bf16.mxu0 0
      %292 = vmatmul.mubr.bf16.gmra.mxu0 %v248
      %v293 = vpop.f32.mrf.mxu0
      %v294 = vadd.f32 0.0, %v293
      %v295 = vpop.f32.mrf.mxu0
      %v296 = vpop.f32.mrf.mxu0
      %v297 = vadd.f32 0.0, %v296
      %v298 = vpop.f32.mrf.mxu0
      %299 = vmatprep.mubr.bf16.mxu0 0
      %300 = vmatmul.mubr.bf16.gmra.mxu0 %v251
      %v301 = vpop.f32.mrf.mxu0
      %v302 = vadd.f32 0.0, %v301
      %v303 = vpop.f32.mrf.mxu0
      %v304 = vpop.f32.mrf.mxu0
      %v305 = vadd.f32 0.0, %v304
      %v306 = vpop.f32.mrf.mxu0
      %307 = vmatprep.mubr.bf16.mxu0 0
      %308 = vmatmul.mubr.bf16.gmra.mxu0 %v254
      %v309 = vpop.f32.mrf.mxu0
      %v310 = vadd.f32 0.0, %v309
      %v311 = vpop.f32.mrf.mxu0
      %v312 = vpop.f32.mrf.mxu0
      %v313 = vadd.f32 0.0, %v312
      %v314 = vpop.f32.mrf.mxu0
      %315 = vmatprep.mubr.bf16.mxu0 0
      %316 = vmatmul.mubr.bf16.gmra.mxu0 %v257
      %v317 = vpop.f32.mrf.mxu0
      %v318 = vadd.f32 0.0, %v317
      %v319 = vpop.f32.mrf.mxu0
      %v320 = vpop.f32.mrf.mxu0
      %v321 = vadd.f32 0.0, %v320
      %v322 = vpop.f32.mrf.mxu0
      %323 = vdwg.mxu0
      %v324 = vld [vmem:[%s2] sm:$0x1]
      %v326 = vlaneseq
      %v327 = vshrl.u32 %v326, 7
      %v328 = vsub.s32 0, %v327
      %v329 = vrot.slane %v324, %v328
      %v331 = vmul.f32 %v294, %v329
      %v332 = vmul.f32 %v297, %v329
      %v333 = vmul.f32 %v302, %v329
      %v334 = vmul.f32 %v305, %v329
      %v335 = vmul.f32 %v310, %v329
      %v336 = vmul.f32 %v313, %v329
      %v337 = vmul.f32 %v318, %v329
      %v338 = vmul.f32 %v321, %v329
      %v339 = vld [vmem:[%s3] sm:$0x1]
      %v341 = vlaneseq
      %v342 = vshrl.u32 %v341, 7
      %v343 = vsub.s32 0, %v342
      %v344 = vrot.slane %v339, %v343
      %v346 = vadd.f32 %v331, %v344
      %v347 = vadd.f32 %v332, %v344
      %v348 = vadd.f32 %v333, %v344
      %v349 = vadd.f32 %v334, %v344
      %v350 = vadd.f32 %v335, %v344
      %v351 = vadd.f32 %v336, %v344
      %v352 = vadd.f32 %v337, %v344
      %v353 = vadd.f32 %v338, %v344
      %vm354 = vcmask 523264
      %355 = vst.msk [vmem:[%s199] sm:$0xff] %vm354, %v346
      %356 = vst.msk [vmem:[%s199 + $0x8] sm:$0xff] %vm354, %v347
      %357 = vst.msk [vmem:[%s199 + $0x10] sm:$0xff] %vm354, %v348
      %358 = vst.msk [vmem:[%s199 + $0x18] sm:$0xff] %vm354, %v349
      %359 = vst.msk [vmem:[%s199 + $0x20] sm:$0xff] %vm354, %v350
      %360 = vst.msk [vmem:[%s199 + $0x28] sm:$0xff] %vm354, %v351
      %361 = vst.msk [vmem:[%s199 + $0x30] sm:$0xff] %vm354, %v352
      %362 = vst.msk [vmem:[%s199 + $0x38] sm:$0xff] %vm354, %v353
      %s363 = smul.u32 8, %s15
      %p364 = scmp.lt.s32.totalorder %s363, 15
      %s365 = scalar_select %p364, %s363, 15
      %s366 = smul.addr %s365, 8
      %s367 = scalar_lea.vmem %s4, %s366
      // Predicated region
      $region37: #{low_rank_block_forward.4} parent=35 // pred_check
        %p368 = pneg %p122
      $region38: #{low_rank_block_forward.4} parent=35 // pred_check_branch
        %370 = sbr.rel (%p368) target = $region40
      $region39: #{low_rank_block_forward.4} parent=35 // pred_region
        %s371 = smul.u32 8, %s15
      $region40: #{low_rank_block_forward.4} parent=35 // pred_fallthru
        _
    $region36: #{low_rank_block_forward.4} parent=5 // pred_fallthru
      _
    %p372 = scmp.le.s32.totalorder 2, %s10
    // Predicated region
    $region41: #{low_rank_block_forward.4} parent=5 // pred_check
      %p373 = pneg %p372
    $region42: #{low_rank_block_forward.4} parent=5 // pred_check_branch
      %375 = sbr.rel (%p373) target = $region44
    $region43: #{low_rank_block_forward.4} parent=5 // pred_region
      %s376 = ssub.s32 %s10, 2
      // Predicated region
      $region45: #{low_rank_block_forward.4} parent=43 // pred_check
        %p377 = pneg %p128
      $region46: #{low_rank_block_forward.4} parent=43 // pred_check_branch
        %379 = sbr.rel (%p377) target = $region48
      $region47: #{low_rank_block_forward.4} parent=43 // pred_region
        %s380 = smul.u32 8, %s16
        %p381 = scmp.lt.s32.totalorder %s380, 15
        %s382 = scalar_select %p381, %s380, 15
        %s383 = smul.addr %s382, 8
        %s384 = scalar_lea.vmem %s4, %s383
      $region48: #{low_rank_block_forward.4} parent=43 // pred_fallthru
        _
    $region44: #{low_rank_block_forward.4} parent=5 // pred_fallthru
      _
  $region6: #{low_rank_block_forward.4} parent=0 // loop_footer
    %s14 = sadd.s32 1, %s10
  $region7: #{low_rank_block_forward.4} parent=0 // loop_footer_branch
    %9 = sbr.rel target = $region3
  $region8: #{low_rank_block_forward.4} parent=0 // loop_exit
    _

// kernel: low_rank_block_forward.3
$region0: #{low_rank_block_forward.3}
  #allocation0 [shape = 'u32[]', space=smem, size = 0x4, offset = 0x4, fixed_abs, tag = 'smem constant byte address 0x4 - core index']
  #allocation1 [shape = 'u32[144,128]{1,0:T(1,128)}', space=vmem, size = 0x12000, scoped, tag = 'internal scratch']
  %s0 = inlined_call_operand.vmem [shape: bf16[128,288], index: 0, kind: input, shape index: {}]
  %s1 = inlined_call_operand.vmem [shape: bf16[288,64], index: 1, kind: input, shape index: {}]
  %s2 = inlined_call_operand.vmem [shape: bf16[64,64], index: 2, kind: input, shape index: {}]
  %s3 = inlined_call_operand.vmem [shape: f32[1,64], index: 3, kind: input, shape index: {}]
  %s4 = inlined_call_operand.vmem [shape: f32[1,64], index: 4, kind: input, shape index: {}]
  %s5 = inlined_call_operand.vmem [shape: bf16[128,64], index: 5, kind: output, shape index: {}]
  %s6 = sld [smem:[#allocation0]]
  $region53: #{low_rank_block_forward.3} parent=0
    _
  %s8 = ssub.s32 1, %s6
  %s9 = scalar_select 0, %s8, %s6
  loop: start=0, step=1, limit=4
  $region2: #{low_rank_block_forward.3} parent=0 // loop_pre_header
    _
  $region3: #{low_rank_block_forward.3} parent=0 // loop_header
    %s11 = sphi 0, %s15
    %p12 = scmp.ge.s32.totalorder %s11, 4
    %s21 = sphi 0, %s23
    %s24 = sphi 0, %s21
    %s25 = sphi 0, %s24
    %s41 = sphi 0, %s25
    %s45 = sphi 0, %s45
    %s47 = sphi 0, %s45
    %s48 = sphi 0, %s47
    %s62 = sphi 0, %s48
    %s66 = sphi 0, %s66
    %s68 = sphi 0, %s66
    %s69 = sphi 0, %s68
    %s83 = sphi 0, %s69
    %s87 = sphi 0, %s87
    %s89 = sphi 0, %s87
    %s90 = sphi 0, %s89
    %s104 = sphi 0, %s90
    %s108 = sphi 0, %s108
    %s110 = sphi 0, %s108
    %s111 = sphi 0, %s110
    %s125 = sphi 0, %s111
    %s131 = sphi 0, %s133
    %s134 = sphi 0, %s131
    %s135 = sphi 0, %s134
    %s151 = sphi 0, %s135
  $region4: #{low_rank_block_forward.3} parent=0 // loop_header_branch
    %14 = sbr.rel (%p12) target = $region8
  $region5: #{low_rank_block_forward.3} parent=0 // loop_body
    %s16 = ssub.s32 %s11, 1
    %s17 = ssub.s32 %s11, 2
    %s18 = sadd.s32 %s11, 1
    %s19 = ssub.s32 %s11, %s18
    %p20 = scmp.eq.s32.totalorder %s19, 0
    %s22 = sadd.s32 %s21, 1
    %s23 = scalar_select %p20, %s21, %s22
    %p26 = pneg %p20
    %p27 = scmp.eq.s32.totalorder %s11, 1
    %p28 = por %p26, %p27
    %p29 = scmp.ne.s32.totalorder %s21, %s24
    %p30 = scmp.eq.s32.totalorder %s11, 0
    %p31 = por %p29, %p30
    %p32 = scmp.ne.s32.totalorder %s21, %s24
    %p33 = scmp.eq.s32.totalorder %s16, 1
    %p34 = por %p32, %p33
    %p35 = scmp.ne.s32.totalorder %s24, %s25
    %p36 = scmp.eq.s32.totalorder %s16, 0
    %p37 = por %p35, %p36
    %p38 = scmp.ne.s32.totalorder %s24, %s25
    %p39 = scmp.eq.s32.totalorder %s17, 1
    %p40 = por %p38, %p39
    %p42 = scmp.ne.s32.totalorder %s25, %s41
    %p43 = scmp.eq.s32.totalorder %s17, 0
    %p44 = por %p42, %p43
    %s46 = sadd.s32 %s45, 1
    %p49 = scmp.eq.s32.totalorder %s11, 1
    %p50 = scmp.ne.s32.totalorder %s45, %s47
    %p51 = scmp.eq.s32.totalorder %s11, 0
    %p52 = por %p50, %p51
    %p53 = scmp.ne.s32.totalorder %s45, %s47
    %p54 = scmp.eq.s32.totalorder %s16, 1
    %p55 = por %p53, %p54
    %p56 = scmp.ne.s32.totalorder %s47, %s48
    %p57 = scmp.eq.s32.totalorder %s16, 0
    %p58 = por %p56, %p57
    %p59 = scmp.ne.s32.totalorder %s47, %s48
    %p60 = scmp.eq.s32.totalorder %s17, 1
    %p61 = por %p59, %p60
    %p63 = scmp.ne.s32.totalorder %s48, %s62
    %p64 = scmp.eq.s32.totalorder %s17, 0
    %p65 = por %p63, %p64
    %s67 = sadd.s32 %s66, 1
    %p70 = scmp.eq.s32.totalorder %s11, 1
    %p71 = scmp.ne.s32.totalorder %s66, %s68
    %p72 = scmp.eq.s32.totalorder %s11, 0
    %p73 = por %p71, %p72
    %p74 = scmp.ne.s32.totalorder %s66, %s68
    %p75 = scmp.eq.s32.totalorder %s16, 1
    %p76 = por %p74, %p75
    %p77 = scmp.ne.s32.totalorder %s68, %s69
    %p78 = scmp.eq.s32.totalorder %s16, 0
    %p79 = por %p77, %p78
    %p80 = scmp.ne.s32.totalorder %s68, %s69
    %p81 = scmp.eq.s32.totalorder %s17, 1
    %p82 = por %p80, %p81
    %p84 = scmp.ne.s32.totalorder %s69, %s83
    %p85 = scmp.eq.s32.totalorder %s17, 0
    %p86 = por %p84, %p85
    %s88 = sadd.s32 %s87, 1
    %p91 = scmp.eq.s32.totalorder %s11, 1
    %p92 = scmp.ne.s32.totalorder %s87, %s89
    %p93 = scmp.eq.s32.totalorder %s11, 0
    %p94 = por %p92, %p93
    %p95 = scmp.ne.s32.totalorder %s87, %s89
    %p96 = scmp.eq.s32.totalorder %s16, 1
    %p97 = por %p95, %p96
    %p98 = scmp.ne.s32.totalorder %s89, %s90
    %p99 = scmp.eq.s32.totalorder %s16, 0
    %p100 = por %p98, %p99
    %p101 = scmp.ne.s32.totalorder %s89, %s90
    %p102 = scmp.eq.s32.totalorder %s17, 1
    %p103 = por %p101, %p102
    %p105 = scmp.ne.s32.totalorder %s90, %s104
    %p106 = scmp.eq.s32.totalorder %s17, 0
    %p107 = por %p105, %p106
    %s109 = sadd.s32 %s108, 1
    %p112 = scmp.eq.s32.totalorder %s11, 1
    %p113 = scmp.ne.s32.totalorder %s108, %s110
    %p114 = scmp.eq.s32.totalorder %s11, 0
    %p115 = por %p113, %p114
    %p116 = scmp.ne.s32.totalorder %s108, %s110
    %p117 = scmp.eq.s32.totalorder %s16, 1
    %p118 = por %p116, %p117
    %p119 = scmp.ne.s32.totalorder %s110, %s111
    %p120 = scmp.eq.s32.totalorder %s16, 0
    %p121 = por %p119, %p120
    %p122 = scmp.ne.s32.totalorder %s110, %s111
    %p123 = scmp.eq.s32.totalorder %s17, 1
    %p124 = por %p122, %p123
    %p126 = scmp.ne.s32.totalorder %s111, %s125
    %p127 = scmp.eq.s32.totalorder %s17, 0
    %p128 = por %p126, %p127
    %s129 = ssub.s32 %s11, %s18
    %p130 = scmp.eq.s32.totalorder %s129, 0
    %s132 = sadd.s32 %s131, 1
    %s133 = scalar_select %p130, %s131, %s132
    %p136 = pneg %p130
    %p137 = scmp.eq.s32.totalorder %s11, 1
    %p138 = por %p136, %p137
    %p139 = scmp.ne.s32.totalorder %s131, %s134
    %p140 = scmp.eq.s32.totalorder %s11, 0
    %p141 = por %p139, %p140
    %p142 = scmp.ne.s32.totalorder %s131, %s134
    %p143 = scmp.eq.s32.totalorder %s16, 1
    %p144 = por %p142, %p143
    %p145 = scmp.ne.s32.totalorder %s134, %s135
    %p146 = scmp.eq.s32.totalorder %s16, 0
    %p147 = por %p145, %p146
    %p148 = scmp.ne.s32.totalorder %s134, %s135
    %p149 = scmp.eq.s32.totalorder %s17, 1
    %p150 = por %p148, %p149
    %p152 = scmp.ne.s32.totalorder %s135, %s151
    %p153 = scmp.eq.s32.totalorder %s17, 0
    %p154 = por %p152, %p153
    %p155 = scmp.le.s32.totalorder 1, %s11
    %p156 = scmp.lt.s32.totalorder %s11, 3
    %p157 = pnand %p155, %p156
    %p158 = pneg %p157
    // Predicated region
    $region9: #{low_rank_block_forward.3} parent=5 // pred_check
      _
    $region10: #{low_rank_block_forward.3} parent=5 // pred_check_branch
      %160 = sbr.rel (%p157) target = $region12
    $region11: #{low_rank_block_forward.3} parent=5 // pred_region
      %s161 = ssub.s32 %s11, 1
      // Predicated region
      $region13: #{low_rank_block_forward.3} parent=11 // pred_check
        %p162 = pneg %p58
      $region14: #{low_rank_block_forward.3} parent=11 // pred_check_branch
        %164 = sbr.rel (%p162) target = $region16
      $region15: #{low_rank_block_forward.3} parent=11 // pred_region
        _
      $region16: #{low_rank_block_forward.3} parent=11 // pred_fallthru
        _
      // Predicated region
      $region17: #{low_rank_block_forward.3} parent=11 // pred_check
        %p165 = pneg %p79
      $region18: #{low_rank_block_forward.3} parent=11 // pred_check_branch
        %167 = sbr.rel (%p165) target = $region20
      $region19: #{low_rank_block_forward.3} parent=11 // pred_region
        _
      $region20: #{low_rank_block_forward.3} parent=11 // pred_fallthru
        _
      // Predicated region
      $region21: #{low_rank_block_forward.3} parent=11 // pred_check
        %p168 = pneg %p100
      $region22: #{low_rank_block_forward.3} parent=11 // pred_check_branch
        %170 = sbr.rel (%p168) target = $region24
      $region23: #{low_rank_block_forward.3} parent=11 // pred_region
        _
      $region24: #{low_rank_block_forward.3} parent=11 // pred_fallthru
        _
      // Predicated region
      $region25: #{low_rank_block_forward.3} parent=11 // pred_check
        %p171 = pneg %p121
      $region26: #{low_rank_block_forward.3} parent=11 // pred_check_branch
        %173 = sbr.rel (%p171) target = $region28
      $region27: #{low_rank_block_forward.3} parent=11 // pred_region
        _
      $region28: #{low_rank_block_forward.3} parent=11 // pred_fallthru
        _
    $region12: #{low_rank_block_forward.3} parent=5 // pred_fallthru
      _
    %p174 = scmp.lt.s32.totalorder %s11, 2
    // Predicated region
    $region29: #{low_rank_block_forward.3} parent=5 // pred_check
      %p175 = pneg %p174
    $region30: #{low_rank_block_forward.3} parent=5 // pred_check_branch
      %177 = sbr.rel (%p175) target = $region32
    $region31: #{low_rank_block_forward.3} parent=5 // pred_region
      // Predicated region
      $region33: #{low_rank_block_forward.3} parent=31 // pred_check
        %p178 = pneg %p31
      $region34: #{low_rank_block_forward.3} parent=31 // pred_check_branch
        %180 = sbr.rel (%p178) target = $region36
      $region35: #{low_rank_block_forward.3} parent=31 // pred_region
        %s181 = smul.u32 8, %s11
        %p182 = scmp.lt.s32.totalorder %s181, 15
        %s183 = scalar_select %p182, %s181, 15
        %s184 = smul.addr %s183, 3
        %s185 = smul.addr %s184, 4
        %s186 = scalar_lea.vmem %s0, %s185
        %s187 = smul.u32 8, %s11
      $region36: #{low_rank_block_forward.3} parent=31 // pred_fallthru
        _
    $region32: #{low_rank_block_forward.3} parent=5 // pred_fallthru
      _
    %p188 = scmp.le.s32.totalorder 1, %s11
    %p189 = scmp.lt.s32.totalorder %s11, 3
    %p190 = pnand %p188, %p189
    %p191 = pneg %p190
    // Predicated region
    $region37: #{low_rank_block_forward.3} parent=5 // pred_check
      _
    $region38: #{low_rank_block_forward.3} parent=5 // pred_check_branch
      %193 = sbr.rel (%p190) target = $region40
    $region39: #{low_rank_block_forward.3} parent=5 // pred_region
      %s194 = ssub.s32 %s11, 1
      %s195 = smul.u32 8, %s16
      %p196 = scmp.lt.s32.totalorder %s195, 15
      %s197 = scalar_select %p196, %s195, 15
      %s198 = smul.addr %s197, 3
      %s199 = smul.addr %s198, 4
      %s200 = scalar_lea.vmem %s0, %s199
      %p201 = pneg %p37
      %p202 = pneg %p34
      %p203 = pneg %p58
      %p204 = pneg %p55
      %p205 = pneg %p79
      %p206 = pneg %p76
      %p207 = pneg %p100
      %p208 = pneg %p97
      %p209 = pneg %p121
      %p210 = pneg %p118
      %p211 = pneg %p147
      %p212 = pneg %p144
      %s213 = smul.u32 8, %s16
      %p214 = scmp.lt.s32.totalorder %s213, 15
      %s215 = scalar_select %p214, %s213, 15
      %s216 = smul.addr %s215, 4
      %s217 = scalar_lea.vmem %s5, %s216
      %s218 = smul.u32 8, %s16
      %p219 = scmp.lt.s32.totalorder %s218, 15
      %s220 = scalar_select %p219, %s218, 15
      %s221 = smul.addr %s220, 3
      %s222 = smul.addr %s221, 4
      %s223 = scalar_lea.vmem %s0, %s222
      %s224 = smul.u32 8, %s16
      %s225 = smul.u32 8, %s16
      %p226 = scmp.lt.s32.totalorder %s225, 15
      %s227 = scalar_select %p226, %s225, 15
      %s228 = smul.addr %s227, 4
      %s229 = scalar_lea.vmem %s5, %s228
      %s230 = smul.u32 8, %s16
      %v232 = vld [vmem:[%s223] sm:$0xff]
      %v233 = vld [vmem:[%s223 + $0x8] sm:$0xf]
      %v234 = vld [vmem:[%s223 + $0xc] sm:$0xff]
      %v235 = vld [vmem:[%s223 + $0x14] sm:$0xf]
      %v236 = vld [vmem:[%s223 + $0x18] sm:$0xff]
      %v237 = vld [vmem:[%s223 + $0x20] sm:$0xf]
      %v238 = vld [vmem:[%s223 + $0x24] sm:$0xff]
      %v239 = vld [vmem:[%s223 + $0x2c] sm:$0xf]
      %v240 = vld [vmem:[%s223 + $0x30] sm:$0xff]
      %v241 = vld [vmem:[%s223 + $0x38] sm:$0xf]
      %v242 = vld [vmem:[%s223 + $0x3c] sm:$0xff]
      %v243 = vld [vmem:[%s223 + $0x44] sm:$0xf]
      %v244 = vld [vmem:[%s223 + $0x48] sm:$0xff]
      %v245 = vld [vmem:[%s223 + $0x50] sm:$0xf]
      %v246 = vld [vmem:[%s223 + $0x54] sm:$0xff]
      %v247 = vld [vmem:[%s223 + $0x5c] sm:$0xf]
      %v248 = vld [vmem:[%s1] sm:$0xf]
      %v249 = vld [vmem:[%s1 + $0x4] sm:$0xf]
      %v250 = vld [vmem:[%s1 + $0x8] sm:$0xf]
      %v251 = vld [vmem:[%s1 + $0xc] sm:$0xf]
      %v252 = vld [vmem:[%s1 + $0x10] sm:$0xf]
      %v253 = vld [vmem:[%s1 + $0x14] sm:$0xf]
      %v254 = vld [vmem:[%s1 + $0x18] sm:$0xf]
      %v255 = vld [vmem:[%s1 + $0x1c] sm:$0xf]
      %v256 = vld [vmem:[%s1 + $0x20] sm:$0xf]
      %v257 = vld [vmem:[%s1 + $0x24] sm:$0xf]
      %v258 = vld [vmem:[%s1 + $0x28] sm:$0xf]
      %v259 = vld [vmem:[%s1 + $0x2c] sm:$0xf]
      %v260 = vld [vmem:[%s1 + $0x30] sm:$0xf]
      %v261 = vld [vmem:[%s1 + $0x34] sm:$0xf]
      %v262 = vld [vmem:[%s1 + $0x38] sm:$0xf]
      %v263 = vld [vmem:[%s1 + $0x3c] sm:$0xf]
      %v264 = vld [vmem:[%s1 + $0x40] sm:$0xf]
      %v265 = vld [vmem:[%s1 + $0x44] sm:$0xf]
      %v266 = vld [vmem:[%s1 + $0x48] sm:$0xf]
      %v267 = vld [vmem:[%s1 + $0x4c] sm:$0xf]
      %v268 = vld [vmem:[%s1 + $0x50] sm:$0xf]
      %v269 = vld [vmem:[%s1 + $0x54] sm:$0xf]
      %v270 = vld [vmem:[%s1 + $0x58] sm:$0xf]
      %v271 = vld [vmem:[%s1 + $0x5c] sm:$0xf]
      %v272 = vld [vmem:[%s1 + $0x60] sm:$0xf]
      %v273 = vld [vmem:[%s1 + $0x64] sm:$0xf]
      %v274 = vld [vmem:[%s1 + $0x68] sm:$0xf]
      %v275 = vld [vmem:[%s1 + $0x6c] sm:$0xf]
      %v276 = vld [vmem:[%s1 + $0x70] sm:$0xf]
      %v277 = vld [vmem:[%s1 + $0x74] sm:$0xf]
      %v278 = vld [vmem:[%s1 + $0x78] sm:$0xf]
      %v279 = vld [vmem:[%s1 + $0x7c] sm:$0xf]
      %v280 = vld [vmem:[%s1 + $0x80] sm:$0xf]
      %v281 = vld [vmem:[%s1 + $0x84] sm:$0xf]
      %v282 = vld [vmem:[%s1 + $0x88] sm:$0xf]
      %v283 = vld [vmem:[%s1 + $0x8c] sm:$0xf]
      %v300 = vunpack.c.l.b16 %v232
      %v301 = vunpack.c.h.b16 %v232
      %v302 = vunpack.c.l.b16 %v233
      %v303 = vunpack.c.l.b16 %v234
      %v304 = vunpack.c.h.b16 %v234
      %v305 = vunpack.c.l.b16 %v235
      %v306 = vunpack.c.l.b16 %v236
      %v307 = vunpack.c.h.b16 %v236
      %v308 = vunpack.c.l.b16 %v237
      %v309 = vunpack.c.l.b16 %v238
      %v310 = vunpack.c.h.b16 %v238
      %v311 = vunpack.c.l.b16 %v239
      %v312 = vunpack.c.l.b16 %v240
      %v313 = vunpack.c.h.b16 %v240
      %v314 = vunpack.c.l.b16 %v241
      %v315 = vunpack.c.l.b16 %v242
      %v316 = vunpack.c.h.b16 %v242
      %v317 = vunpack.c.l.b16 %v243
      %v318 = vunpack.c.l.b16 %v244
      %v319 = vunpack.c.h.b16 %v244
      %v320 = vunpack.c.l.b16 %v245
      %v321 = vunpack.c.l.b16 %v246
      %v322 = vunpack.c.h.b16 %v246
      %v323 = vunpack.c.l.b16 %v247
      %v324 = vpack.c.b16 %v303, %v300
      %v325 = vpack.c.b16 %v304, %v301
      %v326 = vpack.c.b16 %v305, %v302
      %v327 = vpack.c.b16 %v309, %v306
      %v328 = vpack.c.b16 %v310, %v307
      %v329 = vpack.c.b16 %v311, %v308
      %v330 = vpack.c.b16 %v315, %v312
      %v331 = vpack.c.b16 %v316, %v313
      %v332 = vpack.c.b16 %v317, %v314
      %v333 = vpack.c.b16 %v321, %v318
      %v334 = vpack.c.b16 %v322, %v319
      %v335 = vpack.c.b16 %v323, %v320
      %v380 = vunpack.c.l.b16 %v248
      %v381 = vunpack.c.l.b16 %v249
      %v382 = vunpack.c.l.b16 %v250
      %v383 = vunpack.c.l.b16 %v251
      %v384 = vunpack.c.l.b16 %v252
      %v385 = vunpack.c.l.b16 %v253
      %v386 = vunpack.c.l.b16 %v254
      %v387 = vunpack.c.l.b16 %v255
      %v388 = vunpack.c.l.b16 %v256
      %v389 = vunpack.c.l.b16 %v257
      %v390 = vunpack.c.l.b16 %v258
      %v391 = vunpack.c.l.b16 %v259
      %v392 = vunpack.c.l.b16 %v260
      %v393 = vunpack.c.l.b16 %v261
      %v394 = vunpack.c.l.b16 %v262
      %v395 = vunpack.c.l.b16 %v263
      %v396 = vunpack.c.l.b16 %v264
      %v397 = vunpack.c.l.b16 %v265
      %v398 = vunpack.c.l.b16 %v266
      %v399 = vunpack.c.l.b16 %v267
      %v400 = vunpack.c.l.b16 %v268
      %v401 = vunpack.c.l.b16 %v269
      %v402 = vunpack.c.l.b16 %v270
      %v403 = vunpack.c.l.b16 %v271
      %v404 = vunpack.c.l.b16 %v272
      %v405 = vunpack.c.l.b16 %v273
      %v406 = vunpack.c.l.b16 %v274
      %v407 = vunpack.c.l.b16 %v275
      %v408 = vunpack.c.l.b16 %v276
      %v409 = vunpack.c.l.b16 %v277
      %v410 = vunpack.c.l.b16 %v278
      %v411 = vunpack.c.l.b16 %v279
      %v412 = vunpack.c.l.b16 %v280
      %v413 = vunpack.c.l.b16 %v281
      %v414 = vunpack.c.l.b16 %v282
      %v415 = vunpack.c.l.b16 %v283
      %v416 = vpack.c.b16 %v381, %v380
      %v417 = vpack.c.b16 %v383, %v382
      %v418 = vpack.c.b16 %v385, %v384
      %v419 = vpack.c.b16 %v387, %v386
      %v420 = vpack.c.b16 %v389, %v388
      %v421 = vpack.c.b16 %v391, %v390
      %v422 = vpack.c.b16 %v393, %v392
      %v423 = vpack.c.b16 %v395, %v394
      %v424 = vpack.c.b16 %v397, %v396
      %v425 = vpack.c.b16 %v399, %v398
      %v426 = vpack.c.b16 %v401, %v400
      %v427 = vpack.c.b16 %v403, %v402
      %v428 = vpack.c.b16 %v405, %v404
      %v429 = vpack.c.b16 %v407, %v406
      %v430 = vpack.c.b16 %v409, %v408
      %v431 = vpack.c.b16 %v411, %v410
      %v432 = vpack.c.b16 %v413, %v412
      %v433 = vpack.c.b16 %v415, %v414
      %vm452 = vcmask 261120
      %v454 = vsel %vm452, %v326, 0
      %v457 = vsel %vm452, %v329, 0
      %v460 = vsel %vm452, %v332, 0
      %v463 = vsel %vm452, %v335, 0
      %465 = vmatprep.subr.bf16.mxu0 0
      %466 = vmatpush1.bf16.msra.mxu0 %v423
      %467 = vmatprep.subr.bf16.mxu0 0
      %468 = vmatpush1.bf16.msra.mxu0 %v422
      %469 = vmatprep.subr.bf16.mxu0 0
      %470 = vmatpush1.bf16.msra.mxu0 %v421
      %471 = vmatprep.subr.bf16.mxu0 0
      %472 = vmatpush1.bf16.msra.mxu0 %v420
      %473 = vmatprep.subr.bf16.mxu0 0
      %474 = vmatpush1.bf16.msra.mxu0 %v419
      %475 = vmatprep.subr.bf16.mxu0 0
      %476 = vmatpush1.bf16.msra.mxu0 %v418
      %477 = vmatprep.subr.bf16.mxu0 0
      %478 = vmatpush1.bf16.msra.mxu0 %v417
      %479 = vmatprep.subr.bf16.mxu0 0
      %480 = vmatpush1.bf16.msra.mxu0 %v416
      %481 = vmatprep.subr.bf16.mxu0 0
      %482 = vmatpush2.bf16.msra.mxu0 %v431
      %483 = vmatprep.subr.bf16.mxu0 0
      %484 = vmatpush2.bf16.msra.mxu0 %v430
      %485 = vmatprep.subr.bf16.mxu0 0
      %486 = vmatpush2.bf16.msra.mxu0 %v429
      %487 = vmatprep.subr.bf16.mxu0 0
      %488 = vmatpush2.bf16.msra.mxu0 %v428
      %489 = vmatprep.subr.bf16.mxu0 0
      %490 = vmatpush2.bf16.msra.mxu0 %v427
      %491 = vmatprep.subr.bf16.mxu0 0
      %492 = vmatpush2.bf16.msra.mxu0 %v426
      %493 = vmatprep.subr.bf16.mxu0 0
      %494 = vmatpush2.bf16.msra.mxu0 %v425
      %495 = vmatprep.subr.bf16.mxu0 0
      %496 = vmatpush2.bf16.msra.mxu0 %v424
      %497 = vmatprep.mubr.bf16.mxu0 %v325
      %498 = vmatmul.mubr.bf16.gmra.mxu0 %v324
      %v499 = vpop.f32.mrf.mxu0
      %v500 = vadd.f32 0.0, %v499
      %v501 = vpop.f32.mrf.mxu0
      %v502 = vpop.f32.mrf.mxu0
      %v503 = vadd.f32 0.0, %v502
      %v504 = vpop.f32.mrf.mxu0
      %505 = vmatprep.mubr.bf16.mxu0 %v328
      %506 = vmatmul.mubr.bf16.gmra.mxu0 %v327
      %v507 = vpop.f32.mrf.mxu0
      %v508 = vadd.f32 0.0, %v507
      %v509 = vpop.f32.mrf.mxu0
      %v510 = vpop.f32.mrf.mxu0
      %v511 = vadd.f32 0.0, %v510
      %v512 = vpop.f32.mrf.mxu0
      %513 = vmatprep.mubr.bf16.mxu0 %v331
      %514 = vmatmul.mubr.bf16.gmra.mxu0 %v330
      %v515 = vpop.f32.mrf.mxu0
      %v516 = vadd.f32 0.0, %v515
      %v517 = vpop.f32.mrf.mxu0
      %v518 = vpop.f32.mrf.mxu0
      %v519 = vadd.f32 0.0, %v518
      %v520 = vpop.f32.mrf.mxu0
      %521 = vmatprep.mubr.bf16.mxu0 %v334
      %522 = vmatmul.mubr.bf16.gmra.mxu0 %v333
      %v523 = vpop.f32.mrf.mxu0
      %v524 = vadd.f32 0.0, %v523
      %v525 = vpop.f32.mrf.mxu0
      %v526 = vpop.f32.mrf.mxu0
      %v527 = vadd.f32 0.0, %v526
      %v528 = vpop.f32.mrf.mxu0
      %529 = vdwg.mxu0
      %530 = vmatprep.subr.bf16.mxu0 0
      %531 = vmatpush1.bf16.msra.mxu0 0
      %532 = vmatprep.subr.bf16.mxu0 0
      %533 = vmatpush1.bf16.msra.mxu0 0
      %534 = vmatprep.subr.bf16.mxu0 0
      %535 = vmatpush1.bf16.msra.mxu0 0
      %536 = vmatprep.subr.bf16.mxu0 0
      %537 = vmatpush1.bf16.msra.mxu0 0
      %538 = vmatprep.subr.bf16.mxu0 0
      %539 = vmatpush1.bf16.msra.mxu0 0
      %540 = vmatprep.subr.bf16.mxu0 0
      %541 = vmatpush1.bf16.msra.mxu0 0
      %542 = vmatprep.subr.bf16.mxu0 0
      %543 = vmatpush1.bf16.msra.mxu0 %v433
      %544 = vmatprep.subr.bf16.mxu0 0
      %545 = vmatpush1.bf16.msra.mxu0 %v432
      %546 = vmatprep.subr.bf16.mxu0 0
      %547 = vmatpush2.bf16.msra.mxu0 0
      %548 = vmatprep.subr.bf16.mxu0 0
      %549 = vmatpush2.bf16.msra.mxu0 0
      %550 = vmatprep.subr.bf16.mxu0 0
      %551 = vmatpush2.bf16.msra.mxu0 0
      %552 = vmatprep.subr.bf16.mxu0 0
      %553 = vmatpush2.bf16.msra.mxu0 0
      %554 = vmatprep.subr.bf16.mxu0 0
      %555 = vmatpush2.bf16.msra.mxu0 0
      %556 = vmatprep.subr.bf16.mxu0 0
      %557 = vmatpush2.bf16.msra.mxu0 0
      %558 = vmatprep.subr.bf16.mxu0 0
      %559 = vmatpush2.bf16.msra.mxu0 0
      %560 = vmatprep.subr.bf16.mxu0 0
      %561 = vmatpush2.bf16.msra.mxu0 0
      %562 = vmatprep.mubr.bf16.mxu0 0
      %563 = vmatmul.mubr.bf16.gmra.mxu0 %v454
      %v564 = vpop.f32.mrf.mxu0
      %v565 = vadd.f32 %v500, %v564
      %v566 = vpop.f32.mrf.mxu0
      %v567 = vpop.f32.mrf.mxu0
      %v568 = vadd.f32 %v503, %v567
      %v569 = vpop.f32.mrf.mxu0
      %570 = vmatprep.mubr.bf16.mxu0 0
      %571 = vmatmul.mubr.bf16.gmra.mxu0 %v457
      %v572 = vpop.f32.mrf.mxu0
      %v573 = vadd.f32 %v508, %v572
      %v574 = vpop.f32.mrf.mxu0
      %v575 = vpop.f32.mrf.mxu0
      %v576 = vadd.f32 %v511, %v575
      %v577 = vpop.f32.mrf.mxu0
      %578 = vmatprep.mubr.bf16.mxu0 0
      %579 = vmatmul.mubr.bf16.gmra.mxu0 %v460
      %v580 = vpop.f32.mrf.mxu0
      %v581 = vadd.f32 %v516, %v580
      %v582 = vpop.f32.mrf.mxu0
      %v583 = vpop.f32.mrf.mxu0
      %v584 = vadd.f32 %v519, %v583
      %v585 = vpop.f32.mrf.mxu0
      %586 = vmatprep.mubr.bf16.mxu0 0
      %587 = vmatmul.mubr.bf16.gmra.mxu0 %v463
      %v588 = vpop.f32.mrf.mxu0
      %v589 = vadd.f32 %v524, %v588
      %v590 = vpop.f32.mrf.mxu0
      %v591 = vpop.f32.mrf.mxu0
      %v592 = vadd.f32 %v527, %v591
      %v593 = vpop.f32.mrf.mxu0
      %594 = vdwg.mxu0
      %v595 = vpack.c.bf16 %v568, %v565
      %v596 = vpack.c.bf16 %v576, %v573
      %v597 = vpack.c.bf16 %v584, %v581
      %v598 = vpack.c.bf16 %v592, %v589
      %v599 = vld [vmem:[%s2] sm:$0xf]
      %v600 = vld [vmem:[%s2 + $0x4] sm:$0xf]
      %v601 = vld [vmem:[%s2 + $0x8] sm:$0xf]
      %v602 = vld [vmem:[%s2 + $0xc] sm:$0xf]
      %v603 = vld [vmem:[%s2 + $0x10] sm:$0xf]
      %v604 = vld [vmem:[%s2 + $0x14] sm:$0xf]
      %v605 = vld [vmem:[%s2 + $0x18] sm:$0xf]
      %v606 = vld [vmem:[%s2 + $0x1c] sm:$0xf]
      %v615 = vunpack.c.l.b16 %v599
      %v616 = vunpack.c.l.b16 %v600
      %v617 = vunpack.c.l.b16 %v601
      %v618 = vunpack.c.l.b16 %v602
      %v619 = vunpack.c.l.b16 %v603
      %v620 = vunpack.c.l.b16 %v604
      %v621 = vunpack.c.l.b16 %v605
      %v622 = vunpack.c.l.b16 %v606
      %v623 = vpack.c.b16 %v616, %v615
      %v624 = vpack.c.b16 %v618, %v617
      %v625 = vpack.c.b16 %v620, %v619
      %v626 = vpack.c.b16 %v622, %v621
      %vm631 = vcmask 523264
      %v633 = vsel %vm631, %v595, 0
      %v636 = vsel %vm631, %v596, 0
      %v639 = vsel %vm631, %v597, 0
      %v642 = vsel %vm631, %v598, 0
      %644 = vmatprep.subr.bf16.mxu0 0
      %645 = vmatpush1.bf16.msra.mxu0 0
      %646 = vmatprep.subr.bf16.mxu0 0
      %647 = vmatpush1.bf16.msra.mxu0 0
      %648 = vmatprep.subr.bf16.mxu0 0
      %649 = vmatpush1.bf16.msra.mxu0 0
      %650 = vmatprep.subr.bf16.mxu0 0
      %651 = vmatpush1.bf16.msra.mxu0 0
      %652 = vmatprep.subr.bf16.mxu0 0
      %653 = vmatpush1.bf16.msra.mxu0 %v626
      %654 = vmatprep.subr.bf16.mxu0 0
      %655 = vmatpush1.bf16.msra.mxu0 %v625
      %656 = vmatprep.subr.bf16.mxu0 0
      %657 = vmatpush1.bf16.msra.mxu0 %v624
      %658 = vmatprep.subr.bf16.mxu0 0
      %659 = vmatpush1.bf16.msra.mxu0 %v623
      %660 = vmatprep.subr.bf16.mxu0 0
      %661 = vmatpush2.bf16.msra.mxu0 0
      %662 = vmatprep.subr.bf16.mxu0 0
      %663 = vmatpush2.bf16.msra.mxu0 0
      %664 = vmatprep.subr.bf16.mxu0 0
      %665 = vmatpush2.bf16.msra.mxu0 0
      %666 = vmatprep.subr.bf16.mxu0 0
      %667 = vmatpush2.bf16.msra.mxu0 0
      %668 = vmatprep.subr.bf16.mxu0 0
      %669 = vmatpush2.bf16.msra.mxu0 0
      %670 = vmatprep.subr.bf16.mxu0 0
      %671 = vmatpush2.bf16.msra.mxu0 0
      %672 = vmatprep.subr.bf16.mxu0 0
      %673 = vmatpush2.bf16.msra.mxu0 0
      %674 = vmatprep.subr.bf16.mxu0 0
      %675 = vmatpush2.bf16.msra.mxu0 0
      %676 = vmatprep.mubr.bf16.mxu0 0
      %677 = vmatmul.mubr.bf16.gmra.mxu0 %v633
      %v678 = vpop.f32.mrf.mxu0
      %v679 = vadd.f32 0.0, %v678
      %v680 = vpop.f32.mrf.mxu0
      %v681 = vpop.f32.mrf.mxu0
      %v682 = vadd.f32 0.0, %v681
      %v683 = vpop.f32.mrf.mxu0
      %684 = vmatprep.mubr.bf16.mxu0 0
      %685 = vmatmul.mubr.bf16.gmra.mxu0 %v636
      %v686 = vpop.f32.mrf.mxu0
      %v687 = vadd.f32 0.0, %v686
      %v688 = vpop.f32.mrf.mxu0
      %v689 = vpop.f32.mrf.mxu0
      %v690 = vadd.f32 0.0, %v689
      %v691 = vpop.f32.mrf.mxu0
      %692 = vmatprep.mubr.bf16.mxu0 0
      %693 = vmatmul.mubr.bf16.gmra.mxu0 %v639
      %v694 = vpop.f32.mrf.mxu0
      %v695 = vadd.f32 0.0, %v694
      %v696 = vpop.f32.mrf.mxu0
      %v697 = vpop.f32.mrf.mxu0
      %v698 = vadd.f32 0.0, %v697
      %v699 = vpop.f32.mrf.mxu0
      %700 = vmatprep.mubr.bf16.mxu0 0
      %701 = vmatmul.mubr.bf16.gmra.mxu0 %v642
      %v702 = vpop.f32.mrf.mxu0
      %v703 = vadd.f32 0.0, %v702
      %v704 = vpop.f32.mrf.mxu0
      %v705 = vpop.f32.mrf.mxu0
      %v706 = vadd.f32 0.0, %v705
      %v707 = vpop.f32.mrf.mxu0
      %708 = vdwg.mxu0
      %v709 = vld [vmem:[%s3] sm:$0x1]
      %v711 = vlaneseq
      %v712 = vshrl.u32 %v711, 7
      %v713 = vsub.s32 0, %v712
      %v714 = vrot.slane %v709, %v713
      %v716 = vmul.f32 %v679, %v714
      %v717 = vmul.f32 %v682, %v714
      %v718 = vmul.f32 %v687, %v714
      %v719 = vmul.f32 %v690, %v714
      %v720 = vmul.f32 %v695, %v714
      %v721 = vmul.f32 %v698, %v714
      %v722 = vmul.f32 %v703, %v714
      %v723 = vmul.f32 %v706, %v714
      %v724 = vld [vmem:[%s4] sm:$0x1]
      %v726 = vlaneseq
      %v727 = vshrl.u32 %v726, 7
      %v728 = vsub.s32 0, %v727
      %v729 = vrot.slane %v724, %v728
      %v731 = vadd.f32 %v716, %v729
      %v732 = vadd.f32 %v717, %v729
      %v733 = vadd.f32 %v718, %v729
      %v734 = vadd.f32 %v719, %v729
      %v735 = vadd.f32 %v720, %v729
      %v736 = vadd.f32 %v721, %v729
      %v737 = vadd.f32 %v722, %v729
      %v738 = vadd.f32 %v723, %v729
      %v739 = vmax.f32 %v731, 0.0
      %v740 = vmax.f32 %v732, 0.0
      %v741 = vmax.f32 %v733, 0.0
      %v742 = vmax.f32 %v734, 0.0
      %v743 = vmax.f32 %v735, 0.0
      %v744 = vmax.f32 %v736, 0.0
      %v745 = vmax.f32 %v737, 0.0
      %v746 = vmax.f32 %v738, 0.0
      %v747 = vpack.c.bf16 %v740, %v739
      %v748 = vpack.c.bf16 %v742, %v741
      %v749 = vpack.c.bf16 %v744, %v743
      %v750 = vpack.c.bf16 %v746, %v745
      %v755 = vunpack.c.l.b16 %v747
      %v756 = vunpack.c.h.b16 %v747
      %v757 = vunpack.c.l.b16 %v748
      %v758 = vunpack.c.h.b16 %v748
      %v759 = vunpack.c.l.b16 %v749
      %v760 = vunpack.c.h.b16 %v749
      %v761 = vunpack.c.l.b16 %v750
      %v762 = vunpack.c.h.b16 %v750
      %v763 = vpack.c.b16 %v755, %v755
      %v764 = vpack.c.b16 %v756, %v756
      %v765 = vpack.c.b16 %v757, %v757
      %v766 = vpack.c.b16 %v758, %v758
      %v767 = vpack.c.b16 %v759, %v759
      %v768 = vpack.c.b16 %v760, %v760
      %v769 = vpack.c.b16 %v761, %v761
      %v770 = vpack.c.b16 %v762, %v762
      %vm779 = vcmask 519168
      %780 = vst.msk [vmem:[%s229] sm:$0xf] %vm779, %v763
      %781 = vst.msk [vmem:[%s229 + $0x4] sm:$0xf] %vm779, %v764
      %782 = vst.msk [vmem:[%s229 + $0x8] sm:$0xf] %vm779, %v765
      %783 = vst.msk [vmem:[%s229 + $0xc] sm:$0xf] %vm779, %v766
      %784 = vst.msk [vmem:[%s229 + $0x10] sm:$0xf] %vm779, %v767
      %785 = vst.msk [vmem:[%s229 + $0x14] sm:$0xf] %vm779, %v768
      %786 = vst.msk [vmem:[%s229 + $0x18] sm:$0xf] %vm779, %v769
      %787 = vst.msk [vmem:[%s229 + $0x1c] sm:$0xf] %vm779, %v770
      %s788 = smul.u32 8, %s16
      %p789 = scmp.lt.s32.totalorder %s788, 15
      %s790 = scalar_select %p789, %s788, 15
      %s791 = smul.addr %s790, 4
      %s792 = scalar_lea.vmem %s5, %s791
      // Predicated region
      $region41: #{low_rank_block_forward.3} parent=39 // pred_check
        %p793 = pneg %p144
      $region42: #{low_rank_block_forward.3} parent=39 // pred_check_branch
        %795 = sbr.rel (%p793) target = $region44
      $region43: #{low_rank_block_forward.3} parent=39 // pred_region
        %s796 = smul.u32 8, %s16
      $region44: #{low_rank_block_forward.3} parent=39 // pred_fallthru
        _
    $region40: #{low_rank_block_forward.3} parent=5 // pred_fallthru
      _
    %p797 = scmp.le.s32.totalorder 2, %s11
    // Predicated region
    $region45: #{low_rank_block_forward.3} parent=5 // pred_check
      %p798 = pneg %p797
    $region46: #{low_rank_block_forward.3} parent=5 // pred_check_branch
      %800 = sbr.rel (%p798) target = $region48
    $region47: #{low_rank_block_forward.3} parent=5 // pred_region
      %s801 = ssub.s32 %s11, 2
      // Predicated region
      $region49: #{low_rank_block_forward.3} parent=47 // pred_check
        %p802 = pneg %p150
      $region50: #{low_rank_block_forward.3} parent=47 // pred_check_branch
        %804 = sbr.rel (%p802) target = $region52
      $region51: #{low_rank_block_forward.3} parent=47 // pred_region
        %s805 = smul.u32 8, %s17
        %p806 = scmp.lt.s32.totalorder %s805, 15
        %s807 = scalar_select %p806, %s805, 15
        %s808 = smul.addr %s807, 4
        %s809 = scalar_lea.vmem %s5, %s808
      $region52: #{low_rank_block_forward.3} parent=47 // pred_fallthru
        _
    $region48: #{low_rank_block_forward.3} parent=5 // pred_fallthru
      _
  $region6: #{low_rank_block_forward.3} parent=0 // loop_footer
    %s15 = sadd.s32 1, %s11
  $region7: #{low_rank_block_forward.3} parent=0 // loop_footer_branch
    %10 = sbr.rel target = $region3
  $region8: #{low_rank_block_forward.3} parent=0 // loop_exit
    _

// kernel: low_rank_block_forward.5
$region0: #{low_rank_block_forward.5}
  #allocation0 [shape = 'u32[]', space=smem, size = 0x4, offset = 0x4, fixed_abs, tag = 'smem constant byte address 0x4 - core index']
  #allocation1 [shape = 'u32[144,128]{1,0:T(1,128)}', space=vmem, size = 0x12000, scoped, tag = 'internal scratch']
  %s0 = inlined_call_operand.vmem [shape: bf16[128,576], index: 0, kind: input, shape index: {}]
  %s1 = inlined_call_operand.vmem [shape: bf16[576,64], index: 1, kind: input, shape index: {}]
  %s2 = inlined_call_operand.vmem [shape: bf16[64,64], index: 2, kind: input, shape index: {}]
  %s3 = inlined_call_operand.vmem [shape: f32[1,64], index: 3, kind: input, shape index: {}]
  %s4 = inlined_call_operand.vmem [shape: f32[1,64], index: 4, kind: input, shape index: {}]
  %s5 = inlined_call_operand.vmem [shape: f32[128,64], index: 5, kind: input, shape index: {}]
  %s6 = inlined_call_operand.hbm [shape: f32[128,64], index: 6, kind: output, shape index: {}]
  %s7 = sld [smem:[#allocation0]]
  $region57: #{low_rank_block_forward.5} parent=0
    _
  %s9 = ssub.s32 1, %s7
  %s10 = scalar_select 0, %s9, %s7
  $region1: #{low_rank_block_forward.5} parent=0
    #allocation2 [shape = 'u8[65536]{0}', space=vmem, size = 0x10000, scoped, tag = 'output window, operand 0']
    #allocation3 [shape = 's32[2]{0}', space=sflag, size = 0x8, scoped, tag = 'scoped memory for low_rank_block_forward.5']
    %11 = vsyncpa [#allocation3], 0
    %s12 = scalar_lea.sflag [#allocation3], 1
    %13 = vsyncpa %s12, 0
    loop: start=0, step=1, limit=4
    $region2: #{low_rank_block_forward.5} parent=1 // loop_pre_header
      _
    $region3: #{low_rank_block_forward.5} parent=1 // loop_header
      %s15 = sphi 0, %s19
      %p16 = scmp.ge.s32.totalorder %s15, 4
      %s25 = sphi 0, %s27
      %s28 = sphi 0, %s25
      %s29 = sphi 0, %s28
      %s45 = sphi 0, %s29
      %s49 = sphi 0, %s49
      %s51 = sphi 0, %s49
      %s52 = sphi 0, %s51
      %s66 = sphi 0, %s52
      %s70 = sphi 0, %s70
      %s72 = sphi 0, %s70
      %s73 = sphi 0, %s72
      %s87 = sphi 0, %s73
      %s91 = sphi 0, %s91
      %s93 = sphi 0, %s91
      %s94 = sphi 0, %s93
      %s108 = sphi 0, %s94
      %s112 = sphi 0, %s112
      %s114 = sphi 0, %s112
      %s115 = sphi 0, %s114
      %s129 = sphi 0, %s115
      %s135 = sphi 0, %s137
      %s138 = sphi 0, %s135
      %s139 = sphi 0, %s138
      %s155 = sphi 0, %s139
      %s161 = sphi 0, %s163
      %s164 = sphi 0, %s161
      %s165 = sphi 0, %s164
      %s181 = sphi 0, %s165
    $region4: #{low_rank_block_forward.5} parent=1 // loop_header_branch
      %18 = sbr.rel (%p16) target = $region8
    $region5: #{low_rank_block_forward.5} parent=1 // loop_body
      %s20 = ssub.s32 %s15, 1
      %s21 = ssub.s32 %s15, 2
      %s22 = sadd.s32 %s15, 1
      %s23 = ssub.s32 %s15, %s22
      %p24 = scmp.eq.s32.totalorder %s23, 0
      %s26 = sadd.s32 %s25, 1
      %s27 = scalar_select %p24, %s25, %s26
      %p30 = pneg %p24
      %p31 = scmp.eq.s32.totalorder %s15, 1
      %p32 = por %p30, %p31
      %p33 = scmp.ne.s32.totalorder %s25, %s28
      %p34 = scmp.eq.s32.totalorder %s15, 0
      %p35 = por %p33, %p34
      %p36 = scmp.ne.s32.totalorder %s25, %s28
      %p37 = scmp.eq.s32.totalorder %s20, 1
      %p38 = por %p36, %p37
      %p39 = scmp.ne.s32.totalorder %s28, %s29
      %p40 = scmp.eq.s32.totalorder %s20, 0
      %p41 = por %p39, %p40
      %p42 = scmp.ne.s32.totalorder %s28, %s29
      %p43 = scmp.eq.s32.totalorder %s21, 1
      %p44 = por %p42, %p43
      %p46 = scmp.ne.s32.totalorder %s29, %s45
      %p47 = scmp.eq.s32.totalorder %s21, 0
      %p48 = por %p46, %p47
      %s50 = sadd.s32 %s49, 1
      %p53 = scmp.eq.s32.totalorder %s15, 1
      %p54 = scmp.ne.s32.totalorder %s49, %s51
      %p55 = scmp.eq.s32.totalorder %s15, 0
      %p56 = por %p54, %p55
      %p57 = scmp.ne.s32.totalorder %s49, %s51
      %p58 = scmp.eq.s32.totalorder %s20, 1
      %p59 = por %p57, %p58
      %p60 = scmp.ne.s32.totalorder %s51, %s52
      %p61 = scmp.eq.s32.totalorder %s20, 0
      %p62 = por %p60, %p61
      %p63 = scmp.ne.s32.totalorder %s51, %s52
      %p64 = scmp.eq.s32.totalorder %s21, 1
      %p65 = por %p63, %p64
      %p67 = scmp.ne.s32.totalorder %s52, %s66
      %p68 = scmp.eq.s32.totalorder %s21, 0
      %p69 = por %p67, %p68
      %s71 = sadd.s32 %s70, 1
      %p74 = scmp.eq.s32.totalorder %s15, 1
      %p75 = scmp.ne.s32.totalorder %s70, %s72
      %p76 = scmp.eq.s32.totalorder %s15, 0
      %p77 = por %p75, %p76
      %p78 = scmp.ne.s32.totalorder %s70, %s72
      %p79 = scmp.eq.s32.totalorder %s20, 1
      %p80 = por %p78, %p79
      %p81 = scmp.ne.s32.totalorder %s72, %s73
      %p82 = scmp.eq.s32.totalorder %s20, 0
      %p83 = por %p81, %p82
      %p84 = scmp.ne.s32.totalorder %s72, %s73
      %p85 = scmp.eq.s32.totalorder %s21, 1
      %p86 = por %p84, %p85
      %p88 = scmp.ne.s32.totalorder %s73, %s87
      %p89 = scmp.eq.s32.totalorder %s21, 0
      %p90 = por %p88, %p89
      %s92 = sadd.s32 %s91, 1
      %p95 = scmp.eq.s32.totalorder %s15, 1
      %p96 = scmp.ne.s32.totalorder %s91, %s93
      %p97 = scmp.eq.s32.totalorder %s15, 0
      %p98 = por %p96, %p97
      %p99 = scmp.ne.s32.totalorder %s91, %s93
      %p100 = scmp.eq.s32.totalorder %s20, 1
      %p101 = por %p99, %p100
      %p102 = scmp.ne.s32.totalorder %s93, %s94
      %p103 = scmp.eq.s32.totalorder %s20, 0
      %p104 = por %p102, %p103
      %p105 = scmp.ne.s32.totalorder %s93, %s94
      %p106 = scmp.eq.s32.totalorder %s21, 1
      %p107 = por %p105, %p106
      %p109 = scmp.ne.s32.totalorder %s94, %s108
      %p110 = scmp.eq.s32.totalorder %s21, 0
      %p111 = por %p109, %p110
      %s113 = sadd.s32 %s112, 1
      %p116 = scmp.eq.s32.totalorder %s15, 1
      %p117 = scmp.ne.s32.totalorder %s112, %s114
      %p118 = scmp.eq.s32.totalorder %s15, 0
      %p119 = por %p117, %p118
      %p120 = scmp.ne.s32.totalorder %s112, %s114
      %p121 = scmp.eq.s32.totalorder %s20, 1
      %p122 = por %p120, %p121
      %p123 = scmp.ne.s32.totalorder %s114, %s115
      %p124 = scmp.eq.s32.totalorder %s20, 0
      %p125 = por %p123, %p124
      %p126 = scmp.ne.s32.totalorder %s114, %s115
      %p127 = scmp.eq.s32.totalorder %s21, 1
      %p128 = por %p126, %p127
      %p130 = scmp.ne.s32.totalorder %s115, %s129
      %p131 = scmp.eq.s32.totalorder %s21, 0
      %p132 = por %p130, %p131
      %s133 = ssub.s32 %s15, %s22
      %p134 = scmp.eq.s32.totalorder %s133, 0
      %s136 = sadd.s32 %s135, 1
      %s137 = scalar_select %p134, %s135, %s136
      %p140 = pneg %p134
      %p141 = scmp.eq.s32.totalorder %s15, 1
      %p142 = por %p140, %p141
      %p143 = scmp.ne.s32.totalorder %s135, %s138
      %p144 = scmp.eq.s32.totalorder %s15, 0
      %p145 = por %p143, %p144
      %p146 = scmp.ne.s32.totalorder %s135, %s138
      %p147 = scmp.eq.s32.totalorder %s20, 1
      %p148 = por %p146, %p147
      %p149 = scmp.ne.s32.totalorder %s138, %s139
      %p150 = scmp.eq.s32.totalorder %s20, 0
      %p151 = por %p149, %p150
      %p152 = scmp.ne.s32.totalorder %s138, %s139
      %p153 = scmp.eq.s32.totalorder %s21, 1
      %p154 = por %p152, %p153
      %p156 = scmp.ne.s32.totalorder %s139, %s155
      %p157 = scmp.eq.s32.totalorder %s21, 0
      %p158 = por %p156, %p157
      %s159 = ssub.s32 %s15, %s22
      %p160 = scmp.eq.s32.totalorder %s159, 0
      %s162 = sadd.s32 %s161, 1
      %s163 = scalar_select %p160, %s161, %s162
      %p166 = pneg %p160
      %p167 = scmp.eq.s32.totalorder %s15, 1
      %p168 = por %p166, %p167
      %p169 = scmp.ne.s32.totalorder %s161, %s164
      %p170 = scmp.eq.s32.totalorder %s15, 0
      %p171 = por %p169, %p170
      %p172 = scmp.ne.s32.totalorder %s161, %s164
      %p173 = scmp.eq.s32.totalorder %s20, 1
      %p174 = por %p172, %p173
      %p175 = scmp.ne.s32.totalorder %s164, %s165
      %p176 = scmp.eq.s32.totalorder %s20, 0
      %p177 = por %p175, %p176
      %p178 = scmp.ne.s32.totalorder %s164, %s165
      %p179 = scmp.eq.s32.totalorder %s21, 1
      %p180 = por %p178, %p179
      %p182 = scmp.ne.s32.totalorder %s165, %s181
      %p183 = scmp.eq.s32.totalorder %s21, 0
      %p184 = por %p182, %p183
      %p185 = scmp.le.s32.totalorder 1, %s15
      %p186 = scmp.lt.s32.totalorder %s15, 3
      %p187 = pnand %p185, %p186
      %p188 = pneg %p187
      // Predicated region
      $region9: #{low_rank_block_forward.5} parent=5 // pred_check
        _
      $region10: #{low_rank_block_forward.5} parent=5 // pred_check_branch
        %190 = sbr.rel (%p187) target = $region12
      $region11: #{low_rank_block_forward.5} parent=5 // pred_region
        %s191 = ssub.s32 %s15, 1
        // Predicated region
        $region13: #{low_rank_block_forward.5} parent=11 // pred_check
          %p192 = pneg %p62
        $region14: #{low_rank_block_forward.5} parent=11 // pred_check_branch
          %194 = sbr.rel (%p192) target = $region16
        $region15: #{low_rank_block_forward.5} parent=11 // pred_region
          _
        $region16: #{low_rank_block_forward.5} parent=11 // pred_fallthru
          _
        // Predicated region
        $region17: #{low_rank_block_forward.5} parent=11 // pred_check
          %p195 = pneg %p83
        $region18: #{low_rank_block_forward.5} parent=11 // pred_check_branch
          %197 = sbr.rel (%p195) target = $region20
        $region19: #{low_rank_block_forward.5} parent=11 // pred_region
          _
        $region20: #{low_rank_block_forward.5} parent=11 // pred_fallthru
          _
        // Predicated region
        $region21: #{low_rank_block_forward.5} parent=11 // pred_check
          %p198 = pneg %p104
        $region22: #{low_rank_block_forward.5} parent=11 // pred_check_branch
          %200 = sbr.rel (%p198) target = $region24
        $region23: #{low_rank_block_forward.5} parent=11 // pred_region
          _
        $region24: #{low_rank_block_forward.5} parent=11 // pred_fallthru
          _
        // Predicated region
        $region25: #{low_rank_block_forward.5} parent=11 // pred_check
          %p201 = pneg %p125
        $region26: #{low_rank_block_forward.5} parent=11 // pred_check_branch
          %203 = sbr.rel (%p201) target = $region28
        $region27: #{low_rank_block_forward.5} parent=11 // pred_region
          _
        $region28: #{low_rank_block_forward.5} parent=11 // pred_fallthru
          _
      $region12: #{low_rank_block_forward.5} parent=5 // pred_fallthru
        _
      %p204 = scmp.lt.s32.totalorder %s15, 2
      // Predicated region
      $region29: #{low_rank_block_forward.5} parent=5 // pred_check
        %p205 = pneg %p204
      $region30: #{low_rank_block_forward.5} parent=5 // pred_check_branch
        %207 = sbr.rel (%p205) target = $region32
      $region31: #{low_rank_block_forward.5} parent=5 // pred_region
        // Predicated region
        $region33: #{low_rank_block_forward.5} parent=31 // pred_check
          %p208 = pneg %p35
        $region34: #{low_rank_block_forward.5} parent=31 // pred_check_branch
          %210 = sbr.rel (%p208) target = $region36
        $region35: #{low_rank_block_forward.5} parent=31 // pred_region
          %s211 = smul.u32 8, %s15
          %p212 = scmp.lt.s32.totalorder %s211, 15
          %s213 = scalar_select %p212, %s211, 15
          %s214 = smul.addr %s213, 5
          %s215 = smul.addr %s214, 4
          %s216 = scalar_lea.vmem %s0, %s215
          %s217 = smul.u32 8, %s15
        $region36: #{low_rank_block_forward.5} parent=31 // pred_fallthru
          _
        // Predicated region
        $region37: #{low_rank_block_forward.5} parent=31 // pred_check
          %p218 = pneg %p145
        $region38: #{low_rank_block_forward.5} parent=31 // pred_check_branch
          %220 = sbr.rel (%p218) target = $region40
        $region39: #{low_rank_block_forward.5} parent=31 // pred_region
          %s221 = smul.u32 8, %s15
          %p222 = scmp.lt.s32.totalorder %s221, 15
          %s223 = scalar_select %p222, %s221, 15
          %s224 = smul.addr %s223, 8
          %s225 = scalar_lea.vmem %s5, %s224
          %s226 = smul.u32 8, %s15
        $region40: #{low_rank_block_forward.5} parent=31 // pred_fallthru
          _
      $region32: #{low_rank_block_forward.5} parent=5 // pred_fallthru
        _
      %p227 = scmp.le.s32.totalorder 1, %s15
      %p228 = scmp.lt.s32.totalorder %s15, 3
      %p229 = pnand %p227, %p228
      %p230 = pneg %p229
      // Predicated region
      $region41: #{low_rank_block_forward.5} parent=5 // pred_check
        _
      $region42: #{low_rank_block_forward.5} parent=5 // pred_check_branch
        %232 = sbr.rel (%p229) target = $region44
      $region43: #{low_rank_block_forward.5} parent=5 // pred_region
        %s233 = ssub.s32 %s15, 1
        %s234 = smul.u32 8, %s20
        %p235 = scmp.lt.s32.totalorder %s234, 15
        %s236 = scalar_select %p235, %s234, 15
        %s237 = smul.addr %s236, 5
        %s238 = smul.addr %s237, 4
        %s239 = scalar_lea.vmem %s0, %s238
        %p240 = pneg %p41
        %p241 = pneg %p38
        %p242 = pneg %p62
        %p243 = pneg %p59
        %p244 = pneg %p83
        %p245 = pneg %p80
        %p246 = pneg %p104
        %p247 = pneg %p101
        %p248 = pneg %p125
        %p249 = pneg %p122
        %s250 = smul.u32 8, %s20
        %p251 = scmp.lt.s32.totalorder %s250, 15
        %s252 = scalar_select %p251, %s250, 15
        %s253 = smul.addr %s252, 8
        %s254 = scalar_lea.vmem %s5, %s253
        %p255 = pneg %p151
        %p256 = pneg %p148
        %p257 = pneg %p177
        %p258 = pneg %p174
        %s259 = sand.u32 %s164, 1
        %s260 = scalar_lea.sflag [#allocation3], %s259
        %s261 = sand.u32 %s164, 1
        %s262 = smul.addr %s261, 64
        %s263 = scalar_lea.vmem [#allocation2], %s262
        %s264 = smul.u32 8, %s20
        %p265 = scmp.lt.s32.totalorder %s264, 15
        %s266 = scalar_select %p265, %s264, 15
        %s267 = smul.addr %s266, 5
        %s268 = smul.addr %s267, 4
        %s269 = scalar_lea.vmem %s0, %s268
        %s270 = smul.u32 8, %s20
        %s271 = smul.u32 8, %s20
        %p272 = scmp.lt.s32.totalorder %s271, 15
        %s273 = scalar_select %p272, %s271, 15
        %s274 = smul.addr %s273, 8
        %s275 = scalar_lea.vmem %s5, %s274
        %s276 = smul.u32 8, %s20
        %s277 = smul.u32 8, %s20
        %v279 = vld [vmem:[%s269] sm:$0xff]
        %v280 = vld [vmem:[%s269 + $0x8] sm:$0xff]
        %v281 = vld [vmem:[%s269 + $0x10] sm:$0xf]
        %v282 = vld [vmem:[%s269 + $0x14] sm:$0xff]
        %v283 = vld [vmem:[%s269 + $0x1c] sm:$0xff]
        %v284 = vld [vmem:[%s269 + $0x24] sm:$0xf]
        %v285 = vld [vmem:[%s269 + $0x28] sm:$0xff]
        %v286 = vld [vmem:[%s269 + $0x30] sm:$0xff]
        %v287 = vld [vmem:[%s269 + $0x38] sm:$0xf]
        %v288 = vld [vmem:[%s269 + $0x3c] sm:$0xff]
        %v289 = vld [vmem:[%s269 + $0x44] sm:$0xff]
        %v290 = vld [vmem:[%s269 + $0x4c] sm:$0xf]
        %v291 = vld [vmem:[%s269 + $0x50] sm:$0xff]
        %v292 = vld [vmem:[%s269 + $0x58] sm:$0xff]
        %v293 = vld [vmem:[%s269 + $0x60] sm:$0xf]
        %v294 = vld [vmem:[%s269 + $0x64] sm:$0xff]
        %v295 = vld [vmem:[%s269 + $0x6c] sm:$0xff]
        %v296 = vld [vmem:[%s269 + $0x74] sm:$0xf]
        %v297 = vld [vmem:[%s269 + $0x78] sm:$0xff]
        %v298 = vld [vmem:[%s269 + $0x80] sm:$0xff]
        %v299 = vld [vmem:[%s269 + $0x88] sm:$0xf]
        %v300 = vld [vmem:[%s269 + $0x8c] sm:$0xff]
        %v301 = vld [vmem:[%s269 + $0x94] sm:$0xff]
        %v302 = vld [vmem:[%s269 + $0x9c] sm:$0xf]
        %v303 = vld [vmem:[%s1] sm:$0xf]
        %v304 = vld [vmem:[%s1 + $0x4] sm:$0xf]
        %v305 = vld [vmem:[%s1 + $0x8] sm:$0xf]
        %v306 = vld [vmem:[%s1 + $0xc] sm:$0xf]
        %v307 = vld [vmem:[%s1 + $0x10] sm:$0xf]
        %v308 = vld [vmem:[%s1 + $0x14] sm:$0xf]
        %v309 = vld [vmem:[%s1 + $0x18] sm:$0xf]
        %v310 = vld [vmem:[%s1 + $0x1c] sm:$0xf]
        %v311 = vld [vmem:[%s1 + $0x20] sm:$0xf]
        %v312 = vld [vmem:[%s1 + $0x24] sm:$0xf]
        %v313 = vld [vmem:[%s1 + $0x28] sm:$0xf]
        %v314 = vld [vmem:[%s1 + $0x2c] sm:$0xf]
        %v315 = vld [vmem:[%s1 + $0x30] sm:$0xf]
        %v316 = vld [vmem:[%s1 + $0x34] sm:$0xf]
        %v317 = vld [vmem:[%s1 + $0x38] sm:$0xf]
        %v318 = vld [vmem:[%s1 + $0x3c] sm:$0xf]
        %v319 = vld [vmem:[%s1 + $0x40] sm:$0xf]
        %v320 = vld [vmem:[%s1 + $0x44] sm:$0xf]
        %v321 = vld [vmem:[%s1 + $0x48] sm:$0xf]
        %v322 = vld [vmem:[%s1 + $0x4c] sm:$0xf]
        %v323 = vld [vmem:[%s1 + $0x50] sm:$0xf]
        %v324 = vld [vmem:[%s1 + $0x54] sm:$0xf]
        %v325 = vld [vmem:[%s1 + $0x58] sm:$0xf]
        %v326 = vld [vmem:[%s1 + $0x5c] sm:$0xf]
        %v327 = vld [vmem:[%s1 + $0x60] sm:$0xf]
        %v328 = vld [vmem:[%s1 + $0x64] sm:$0xf]
        %v329 = vld [vmem:[%s1 + $0x68] sm:$0xf]
        %v330 = vld [vmem:[%s1 + $0x6c] sm:$0xf]
        %v331 = vld [vmem:[%s1 + $0x70] sm:$0xf]
        %v332 = vld [vmem:[%s1 + $0x74] sm:$0xf]
        %v333 = vld [vmem:[%s1 + $0x78] sm:$0xf]
        %v334 = vld [vmem:[%s1 + $0x7c] sm:$0xf]
        %v335 = vld [vmem:[%s1 + $0x80] sm:$0xf]
        %v336 = vld [vmem:[%s1 + $0x84] sm:$0xf]
        %v337 = vld [vmem:[%s1 + $0x88] sm:$0xf]
        %v338 = vld [vmem:[%s1 + $0x8c] sm:$0xf]
        %v339 = vld [vmem:[%s1 + $0x90] sm:$0xf]
        %v340 = vld [vmem:[%s1 + $0x94] sm:$0xf]
        %v341 = vld [vmem:[%s1 + $0x98] sm:$0xf]
        %v342 = vld [vmem:[%s1 + $0x9c] sm:$0xf]
        %v343 = vld [vmem:[%s1 + $0xa0] sm:$0xf]
        %v344 = vld [vmem:[%s1 + $0xa4] sm:$0xf]
        %v345 = vld [vmem:[%s1 + $0xa8] sm:$0xf]
        %v346 = vld [vmem:[%s1 + $0xac] sm:$0xf]
        %v347 = vld [vmem:[%s1 + $0xb0] sm:$0xf]
        %v348 = vld [vmem:[%s1 + $0xb4] sm:$0xf]
        %v349 = vld [vmem:[%s1 + $0xb8] sm:$0xf]
        %v350 = vld [vmem:[%s1 + $0xbc] sm:$0xf]
        %v351 = vld [vmem:[%s1 + $0xc0] sm:$0xf]
        %v352 = vld [vmem:[%s1 + $0xc4] sm:$0xf]
        %v353 = vld [vmem:[%s1 + $0xc8] sm:$0xf]
        %v354 = vld [vmem:[%s1 + $0xcc] sm:$0xf]
        %v355 = vld [vmem:[%s1 + $0xd0] sm:$0xf]
        %v356 = vld [vmem:[%s1 + $0xd4] sm:$0xf]
        %v357 = vld [vmem:[%s1 + $0xd8] sm:$0xf]
        %v358 = vld [vmem:[%s1 + $0xdc] sm:$0xf]
        %v359 = vld [vmem:[%s1 + $0xe0] sm:$0xf]
        %v360 = vld [vmem:[%s1 + $0xe4] sm:$0xf]
        %v361 = vld [vmem:[%s1 + $0xe8] sm:$0xf]
        %v362 = vld [vmem:[%s1 + $0xec] sm:$0xf]
        %v363 = vld [vmem:[%s1 + $0xf0] sm:$0xf]
        %v364 = vld [vmem:[%s1 + $0xf4] sm:$0xf]
        %v365 = vld [vmem:[%s1 + $0xf8] sm:$0xf]
        %v366 = vld [vmem:[%s1 + $0xfc] sm:$0xf]
        %v367 = vld [vmem:[%s1 + $0x100] sm:$0xf]
        %v368 = vld [vmem:[%s1 + $0x104] sm:$0xf]
        %v369 = vld [vmem:[%s1 + $0x108] sm:$0xf]
        %v370 = vld [vmem:[%s1 + $0x10c] sm:$0xf]
        %v371 = vld [vmem:[%s1 + $0x110] sm:$0xf]
        %v372 = vld [vmem:[%s1 + $0x114] sm:$0xf]
        %v373 = vld [vmem:[%s1 + $0x118] sm:$0xf]
        %v374 = vld [vmem:[%s1 + $0x11c] sm:$0xf]
        %v399 = vunpack.c.l.b16 %v279
        %v400 = vunpack.c.h.b16 %v279
        %v401 = vunpack.c.l.b16 %v280
        %v402 = vunpack.c.h.b16 %v280
        %v403 = vunpack.c.l.b16 %v281
        %v404 = vunpack.c.l.b16 %v282
        %v405 = vunpack.c.h.b16 %v282
        %v406 = vunpack.c.l.b16 %v283
        %v407 = vunpack.c.h.b16 %v283
        %v408 = vunpack.c.l.b16 %v284
        %v409 = vunpack.c.l.b16 %v285
        %v410 = vunpack.c.h.b16 %v285
        %v411 = vunpack.c.l.b16 %v286
        %v412 = vunpack.c.h.b16 %v286
        %v413 = vunpack.c.l.b16 %v287
        %v414 = vunpack.c.l.b16 %v288
        %v415 = vunpack.c.h.b16 %v288
        %v416 = vunpack.c.l.b16 %v289
        %v417 = vunpack.c.h.b16 %v289
        %v418 = vunpack.c.l.b16 %v290
        %v419 = vunpack.c.l.b16 %v291
        %v420 = vunpack.c.h.b16 %v291
        %v421 = vunpack.c.l.b16 %v292
        %v422 = vunpack.c.h.b16 %v292
        %v423 = vunpack.c.l.b16 %v293
        %v424 = vunpack.c.l.b16 %v294
        %v425 = vunpack.c.h.b16 %v294
        %v426 = vunpack.c.l.b16 %v295
        %v427 = vunpack.c.h.b16 %v295
        %v428 = vunpack.c.l.b16 %v296
        %v429 = vunpack.c.l.b16 %v297
        %v430 = vunpack.c.h.b16 %v297
        %v431 = vunpack.c.l.b16 %v298
        %v432 = vunpack.c.h.b16 %v298
        %v433 = vunpack.c.l.b16 %v299
        %v434 = vunpack.c.l.b16 %v300
        %v435 = vunpack.c.h.b16 %v300
        %v436 = vunpack.c.l.b16 %v301
        %v437 = vunpack.c.h.b16 %v301
        %v438 = vunpack.c.l.b16 %v302
        %v439 = vpack.c.b16 %v404, %v399
        %v440 = vpack.c.b16 %v405, %v400
        %v441 = vpack.c.b16 %v406, %v401
        %v442 = vpack.c.b16 %v407, %v402
        %v443 = vpack.c.b16 %v408, %v403
        %v444 = vpack.c.b16 %v414, %v409
        %v445 = vpack.c.b16 %v415, %v410
        %v446 = vpack.c.b16 %v416, %v411
        %v447 = vpack.c.b16 %v417, %v412
        %v448 = vpack.c.b16 %v418, %v413
        %v449 = vpack.c.b16 %v424, %v419
        %v450 = vpack.c.b16 %v425, %v420
        %v451 = vpack.c.b16 %v426, %v421
        %v452 = vpack.c.b16 %v427, %v422
        %v453 = vpack.c.b16 %v428, %v423
        %v454 = vpack.c.b16 %v434, %v429
        %v455 = vpack.c.b16 %v435, %v430
        %v456 = vpack.c.b16 %v436, %v431
        %v457 = vpack.c.b16 %v437, %v432
        %v458 = vpack.c.b16 %v438, %v433
        %v547 = vunpack.c.l.b16 %v303
        %v548 = vunpack.c.l.b16 %v304
        %v549 = vunpack.c.l.b16 %v305
        %v550 = vunpack.c.l.b16 %v306
        %v551 = vunpack.c.l.b16 %v307
        %v552 = vunpack.c.l.b16 %v308
        %v553 = vunpack.c.l.b16 %v309
        %v554 = vunpack.c.l.b16 %v310
        %v555 = vunpack.c.l.b16 %v311
        %v556 = vunpack.c.l.b16 %v312
        %v557 = vunpack.c.l.b16 %v313
        %v558 = vunpack.c.l.b16 %v314
        %v559 = vunpack.c.l.b16 %v315
        %v560 = vunpack.c.l.b16 %v316
        %v561 = vunpack.c.l.b16 %v317
        %v562 = vunpack.c.l.b16 %v318
        %v563 = vunpack.c.l.b16 %v319
        %v564 = vunpack.c.l.b16 %v320
        %v565 = vunpack.c.l.b16 %v321
        %v566 = vunpack.c.l.b16 %v322
        %v567 = vunpack.c.l.b16 %v323
        %v568 = vunpack.c.l.b16 %v324
        %v569 = vunpack.c.l.b16 %v325
        %v570 = vunpack.c.l.b16 %v326
        %v571 = vunpack.c.l.b16 %v327
        %v572 = vunpack.c.l.b16 %v328
        %v573 = vunpack.c.l.b16 %v329
        %v574 = vunpack.c.l.b16 %v330
        %v575 = vunpack.c.l.b16 %v331
        %v576 = vunpack.c.l.b16 %v332
        %v577 = vunpack.c.l.b16 %v333
        %v578 = vunpack.c.l.b16 %v334
        %v579 = vunpack.c.l.b16 %v335
        %v580 = vunpack.c.l.b16 %v336
        %v581 = vunpack.c.l.b16 %v337
        %v582 = vunpack.c.l.b16 %v338
        %v583 = vunpack.c.l.b16 %v339
        %v584 = vunpack.c.l.b16 %v340
        %v585 = vunpack.c.l.b16 %v341
        %v586 = vunpack.c.l.b16 %v342
        %v587 = vunpack.c.l.b16 %v343
        %v588 = vunpack.c.l.b16 %v344
        %v589 = vunpack.c.l.b16 %v345
        %v590 = vunpack.c.l.b16 %v346
        %v591 = vunpack.c.l.b16 %v347
        %v592 = vunpack.c.l.b16 %v348
        %v593 = vunpack.c.l.b16 %v349
        %v594 = vunpack.c.l.b16 %v350
        %v595 = vunpack.c.l.b16 %v351
        %v596 = vunpack.c.l.b16 %v352
        %v597 = vunpack.c.l.b16 %v353
        %v598 = vunpack.c.l.b16 %v354
        %v599 = vunpack.c.l.b16 %v355
        %v600 = vunpack.c.l.b16 %v356
        %v601 = vunpack.c.l.b16 %v357
        %v602 = vunpack.c.l.b16 %v358
        %v603 = vunpack.c.l.b16 %v359
        %v604 = vunpack.c.l.b16 %v360
        %v605 = vunpack.c.l.b16 %v361
        %v606 = vunpack.c.l.b16 %v362
        %v607 = vunpack.c.l.b16 %v363
        %v608 = vunpack.c.l.b16 %v364
        %v609 = vunpack.c.l.b16 %v365
        %v610 = vunpack.c.l.b16 %v366
        %v611 = vunpack.c.l.b16 %v367
        %v612 = vunpack.c.l.b16 %v368
        %v613 = vunpack.c.l.b16 %v369
        %v614 = vunpack.c.l.b16 %v370
        %v615 = vunpack.c.l.b16 %v371
        %v616 = vunpack.c.l.b16 %v372
        %v617 = vunpack.c.l.b16 %v373
        %v618 = vunpack.c.l.b16 %v374
        %v619 = vpack.c.b16 %v548, %v547
        %v620 = vpack.c.b16 %v550, %v549
        %v621 = vpack.c.b16 %v552, %v551
        %v622 = vpack.c.b16 %v554, %v553
        %v623 = vpack.c.b16 %v556, %v555
        %v624 = vpack.c.b16 %v558, %v557
        %v625 = vpack.c.b16 %v560, %v559
        %v626 = vpack.c.b16 %v562, %v561
        %v627 = vpack.c.b16 %v564, %v563
        %v628 = vpack.c.b16 %v566, %v565
        %v629 = vpack.c.b16 %v568, %v567
        %v630 = vpack.c.b16 %v570, %v569
        %v631 = vpack.c.b16 %v572, %v571
        %v632 = vpack.c.b16 %v574, %v573
        %v633 = vpack.c.b16 %v576, %v575
        %v634 = vpack.c.b16 %v578, %v577
        %v635 = vpack.c.b16 %v580, %v579
        %v636 = vpack.c.b16 %v582, %v581
        %v637 = vpack.c.b16 %v584, %v583
        %v638 = vpack.c.b16 %v586, %v585
        %v639 = vpack.c.b16 %v588, %v587
        %v640 = vpack.c.b16 %v590, %v589
        %v641 = vpack.c.b16 %v592, %v591
        %v642 = vpack.c.b16 %v594, %v593
        %v643 = vpack.c.b16 %v596, %v595
        %v644 = vpack.c.b16 %v598, %v597
        %v645 = vpack.c.b16 %v600, %v599
        %v646 = vpack.c.b16 %v602, %v601
        %v647 = vpack.c.b16 %v604, %v603
        %v648 = vpack.c.b16 %v606, %v605
        %v649 = vpack.c.b16 %v608, %v607
        %v650 = vpack.c.b16 %v610, %v609
        %v651 = vpack.c.b16 %v612, %v611
        %v652 = vpack.c.b16 %v614, %v613
        %v653 = vpack.c.b16 %v616, %v615
        %v654 = vpack.c.b16 %v618, %v617
        %vm691 = vcmask 523264
        %v693 = vsel %vm691, %v443, 0
        %v696 = vsel %vm691, %v448, 0
        %v699 = vsel %vm691, %v453, 0
        %v702 = vsel %vm691, %v458, 0
        %704 = vmatprep.subr.bf16.mxu0 0
        %705 = vmatpush1.bf16.msra.mxu0 %v626
        %706 = vmatprep.subr.bf16.mxu0 0
        %707 = vmatpush1.bf16.msra.mxu0 %v625
        %708 = vmatprep.subr.bf16.mxu0 0
        %709 = vmatpush1.bf16.msra.mxu0 %v624
        %710 = vmatprep.subr.bf16.mxu0 0
        %711 = vmatpush1.bf16.msra.mxu0 %v623
        %712 = vmatprep.subr.bf16.mxu0 0
        %713 = vmatpush1.bf16.msra.mxu0 %v622
        %714 = vmatprep.subr.bf16.mxu0 0
        %715 = vmatpush1.bf16.msra.mxu0 %v621
        %716 = vmatprep.subr.bf16.mxu0 0
        %717 = vmatpush1.bf16.msra.mxu0 %v620
        %718 = vmatprep.subr.bf16.mxu0 0
        %719 = vmatpush1.bf16.msra.mxu0 %v619
        %720 = vmatprep.subr.bf16.mxu0 0
        %721 = vmatpush2.bf16.msra.mxu0 %v634
        %722 = vmatprep.subr.bf16.mxu0 0
        %723 = vmatpush2.bf16.msra.mxu0 %v633
        %724 = vmatprep.subr.bf16.mxu0 0
        %725 = vmatpush2.bf16.msra.mxu0 %v632
        %726 = vmatprep.subr.bf16.mxu0 0
        %727 = vmatpush2.bf16.msra.mxu0 %v631
        %728 = vmatprep.subr.bf16.mxu0 0
        %729 = vmatpush2.bf16.msra.mxu0 %v630
        %730 = vmatprep.subr.bf16.mxu0 0
        %731 = vmatpush2.bf16.msra.mxu0 %v629
        %732 = vmatprep.subr.bf16.mxu0 0
        %733 = vmatpush2.bf16.msra.mxu0 %v628
        %734 = vmatprep.subr.bf16.mxu0 0
        %735 = vmatpush2.bf16.msra.mxu0 %v627
        %736 = vmatprep.mubr.bf16.mxu0 %v440
        %737 = vmatmul.mubr.bf16.gmra.mxu0 %v439
        %v738 = vpop.f32.mrf.mxu0
        %v739 = vadd.f32 0.0, %v738
        %v740 = vpop.f32.mrf.mxu0
        %v741 = vpop.f32.mrf.mxu0
        %v742 = vadd.f32 0.0, %v741
        %v743 = vpop.f32.mrf.mxu0
        %744 = vmatprep.mubr.bf16.mxu0 %v445
        %745 = vmatmul.mubr.bf16.gmra.mxu0 %v444
        %v746 = vpop.f32.mrf.mxu0
        %v747 = vadd.f32 0.0, %v746
        %v748 = vpop.f32.mrf.mxu0
        %v749 = vpop.f32.mrf.mxu0
        %v750 = vadd.f32 0.0, %v749
        %v751 = vpop.f32.mrf.mxu0
        %752 = vmatprep.mubr.bf16.mxu0 %v450
        %753 = vmatmul.mubr.bf16.gmra.mxu0 %v449
        %v754 = vpop.f32.mrf.mxu0
        %v755 = vadd.f32 0.0, %v754
        %v756 = vpop.f32.mrf.mxu0
        %v757 = vpop.f32.mrf.mxu0
        %v758 = vadd.f32 0.0, %v757
        %v759 = vpop.f32.mrf.mxu0
        %760 = vmatprep.mubr.bf16.mxu0 %v455
        %761 = vmatmul.mubr.bf16.gmra.mxu0 %v454
        %v762 = vpop.f32.mrf.mxu0
        %v763 = vadd.f32 0.0, %v762
        %v764 = vpop.f32.mrf.mxu0
        %v765 = vpop.f32.mrf.mxu0
        %v766 = vadd.f32 0.0, %v765
        %v767 = vpop.f32.mrf.mxu0
        %768 = vdwg.mxu0
        %769 = vmatprep.subr.bf16.mxu0 0
        %770 = vmatpush1.bf16.msra.mxu0 %v642
        %771 = vmatprep.subr.bf16.mxu0 0
        %772 = vmatpush1.bf16.msra.mxu0 %v641
        %773 = vmatprep.subr.bf16.mxu0 0
        %774 = vmatpush1.bf16.msra.mxu0 %v640
        %775 = vmatprep.subr.bf16.mxu0 0
        %776 = vmatpush1.bf16.msra.mxu0 %v639
        %777 = vmatprep.subr.bf16.mxu0 0
        %778 = vmatpush1.bf16.msra.mxu0 %v638
        %779 = vmatprep.subr.bf16.mxu0 0
        %780 = vmatpush1.bf16.msra.mxu0 %v637
        %781 = vmatprep.subr.bf16.mxu0 0
        %782 = vmatpush1.bf16.msra.mxu0 %v636
        %783 = vmatprep.subr.bf16.mxu0 0
        %784 = vmatpush1.bf16.msra.mxu0 %v635
        %785 = vmatprep.subr.bf16.mxu0 0
        %786 = vmatpush2.bf16.msra.mxu0 %v650
        %787 = vmatprep.subr.bf16.mxu0 0
        %788 = vmatpush2.bf16.msra.mxu0 %v649
        %789 = vmatprep.subr.bf16.mxu0 0
        %790 = vmatpush2.bf16.msra.mxu0 %v648
        %791 = vmatprep.subr.bf16.mxu0 0
        %792 = vmatpush2.bf16.msra.mxu0 %v647
        %793 = vmatprep.subr.bf16.mxu0 0
        %794 = vmatpush2.bf16.msra.mxu0 %v646
        %795 = vmatprep.subr.bf16.mxu0 0
        %796 = vmatpush2.bf16.msra.mxu0 %v645
        %797 = vmatprep.subr.bf16.mxu0 0
        %798 = vmatpush2.bf16.msra.mxu0 %v644
        %799 = vmatprep.subr.bf16.mxu0 0
        %800 = vmatpush2.bf16.msra.mxu0 %v643
        %801 = vmatprep.mubr.bf16.mxu0 %v442
        %802 = vmatmul.mubr.bf16.gmra.mxu0 %v441
        %v803 = vpop.f32.mrf.mxu0
        %v804 = vadd.f32 %v739, %v803
        %v805 = vpop.f32.mrf.mxu0
        %v806 = vpop.f32.mrf.mxu0
        %v807 = vadd.f32 %v742, %v806
        %v808 = vpop.f32.mrf.mxu0
        %809 = vmatprep.mubr.bf16.mxu0 %v447
        %810 = vmatmul.mubr.bf16.gmra.mxu0 %v446
        %v811 = vpop.f32.mrf.mxu0
        %v812 = vadd.f32 %v747, %v811
        %v813 = vpop.f32.mrf.mxu0
        %v814 = vpop.f32.mrf.mxu0
        %v815 = vadd.f32 %v750, %v814
        %v816 = vpop.f32.mrf.mxu0
        %817 = vmatprep.mubr.bf16.mxu0 %v452
        %818 = vmatmul.mubr.bf16.gmra.mxu0 %v451
        %v819 = vpop.f32.mrf.mxu0
        %v820 = vadd.f32 %v755, %v819
        %v821 = vpop.f32.mrf.mxu0
        %v822 = vpop.f32.mrf.mxu0
        %v823 = vadd.f32 %v758, %v822
        %v824 = vpop.f32.mrf.mxu0
        %825 = vmatprep.mubr.bf16.mxu0 %v457
        %826 = vmatmul.mubr.bf16.gmra.mxu0 %v456
        %v827 = vpop.f32.mrf.mxu0
        %v828 = vadd.f32 %v763, %v827
        %v829 = vpop.f32.mrf.mxu0
        %v830 = vpop.f32.mrf.mxu0
        %v831 = vadd.f32 %v766, %v830
        %v832 = vpop.f32.mrf.mxu0
        %833 = vdwg.mxu0
        %834 = vmatprep.subr.bf16.mxu0 0
        %835 = vmatpush1.bf16.msra.mxu0 0
        %836 = vmatprep.subr.bf16.mxu0 0
        %837 = vmatpush1.bf16.msra.mxu0 0
        %838 = vmatprep.subr.bf16.mxu0 0
        %839 = vmatpush1.bf16.msra.mxu0 0
        %840 = vmatprep.subr.bf16.mxu0 0
        %841 = vmatpush1.bf16.msra.mxu0 0
        %842 = vmatprep.subr.bf16.mxu0 0
        %843 = vmatpush1.bf16.msra.mxu0 %v654
        %844 = vmatprep.subr.bf16.mxu0 0
        %845 = vmatpush1.bf16.msra.mxu0 %v653
        %846 = vmatprep.subr.bf16.mxu0 0
        %847 = vmatpush1.bf16.msra.mxu0 %v652
        %848 = vmatprep.subr.bf16.mxu0 0
        %849 = vmatpush1.bf16.msra.mxu0 %v651
        %850 = vmatprep.subr.bf16.mxu0 0
        %851 = vmatpush2.bf16.msra.mxu0 0
        %852 = vmatprep.subr.bf16.mxu0 0
        %853 = vmatpush2.bf16.msra.mxu0 0
        %854 = vmatprep.subr.bf16.mxu0 0
        %855 = vmatpush2.bf16.msra.mxu0 0
        %856 = vmatprep.subr.bf16.mxu0 0
        %857 = vmatpush2.bf16.msra.mxu0 0
        %858 = vmatprep.subr.bf16.mxu0 0
        %859 = vmatpush2.bf16.msra.mxu0 0
        %860 = vmatprep.subr.bf16.mxu0 0
        %861 = vmatpush2.bf16.msra.mxu0 0
        %862 = vmatprep.subr.bf16.mxu0 0
        %863 = vmatpush2.bf16.msra.mxu0 0
        %864 = vmatprep.subr.bf16.mxu0 0
        %865 = vmatpush2.bf16.msra.mxu0 0
        %866 = vmatprep.mubr.bf16.mxu0 0
        %867 = vmatmul.mubr.bf16.gmra.mxu0 %v693
        %v868 = vpop.f32.mrf.mxu0
        %v869 = vadd.f32 %v804, %v868
        %v870 = vpop.f32.mrf.mxu0
        %v871 = vpop.f32.mrf.mxu0
        %v872 = vadd.f32 %v807, %v871
        %v873 = vpop.f32.mrf.mxu0
        %874 = vmatprep.mubr.bf16.mxu0 0
        %875 = vmatmul.mubr.bf16.gmra.mxu0 %v696
        %v876 = vpop.f32.mrf.mxu0
        %v877 = vadd.f32 %v812, %v876
        %v878 = vpop.f32.mrf.mxu0
        %v879 = vpop.f32.mrf.mxu0
        %v880 = vadd.f32 %v815, %v879
        %v881 = vpop.f32.mrf.mxu0
        %882 = vmatprep.mubr.bf16.mxu0 0
        %883 = vmatmul.mubr.bf16.gmra.mxu0 %v699
        %v884 = vpop.f32.mrf.mxu0
        %v885 = vadd.f32 %v820, %v884
        %v886 = vpop.f32.mrf.mxu0
        %v887 = vpop.f32.mrf.mxu0
        %v888 = vadd.f32 %v823, %v887
        %v889 = vpop.f32.mrf.mxu0
        %890 = vmatprep.mubr.bf16.mxu0 0
        %891 = vmatmul.mubr.bf16.gmra.mxu0 %v702
        %v892 = vpop.f32.mrf.mxu0
        %v893 = vadd.f32 %v828, %v892
        %v894 = vpop.f32.mrf.mxu0
        %v895 = vpop.f32.mrf.mxu0
        %v896 = vadd.f32 %v831, %v895
        %v897 = vpop.f32.mrf.mxu0
        %898 = vdwg.mxu0
        %v899 = vpack.c.bf16 %v872, %v869
        %v900 = vpack.c.bf16 %v880, %v877
        %v901 = vpack.c.bf16 %v888, %v885
        %v902 = vpack.c.bf16 %v896, %v893
        %v903 = vld [vmem:[%s2] sm:$0xf]
        %v904 = vld [vmem:[%s2 + $0x4] sm:$0xf]
        %v905 = vld [vmem:[%s2 + $0x8] sm:$0xf]
        %v906 = vld [vmem:[%s2 + $0xc] sm:$0xf]
        %v907 = vld [vmem:[%s2 + $0x10] sm:$0xf]
        %v908 = vld [vmem:[%s2 + $0x14] sm:$0xf]
        %v909 = vld [vmem:[%s2 + $0x18] sm:$0xf]
        %v910 = vld [vmem:[%s2 + $0x1c] sm:$0xf]
        %v919 = vunpack.c.l.b16 %v903
        %v920 = vunpack.c.l.b16 %v904
        %v921 = vunpack.c.l.b16 %v905
        %v922 = vunpack.c.l.b16 %v906
        %v923 = vunpack.c.l.b16 %v907
        %v924 = vunpack.c.l.b16 %v908
        %v925 = vunpack.c.l.b16 %v909
        %v926 = vunpack.c.l.b16 %v910
        %v927 = vpack.c.b16 %v920, %v919
        %v928 = vpack.c.b16 %v922, %v921
        %v929 = vpack.c.b16 %v924, %v923
        %v930 = vpack.c.b16 %v926, %v925
        %v936 = vsel %vm691, %v899, 0
        %v939 = vsel %vm691, %v900, 0
        %v942 = vsel %vm691, %v901, 0
        %v945 = vsel %vm691, %v902, 0
        %947 = vmatprep.subr.bf16.mxu0 0
        %948 = vmatpush1.bf16.msra.mxu0 0
        %949 = vmatprep.subr.bf16.mxu0 0
        %950 = vmatpush1.bf16.msra.mxu0 0
        %951 = vmatprep.subr.bf16.mxu0 0
        %952 = vmatpush1.bf16.msra.mxu0 0
        %953 = vmatprep.subr.bf16.mxu0 0
        %954 = vmatpush1.bf16.msra.mxu0 0
        %955 = vmatprep.subr.bf16.mxu0 0
        %956 = vmatpush1.bf16.msra.mxu0 %v930
        %957 = vmatprep.subr.bf16.mxu0 0
        %958 = vmatpush1.bf16.msra.mxu0 %v929
        %959 = vmatprep.subr.bf16.mxu0 0
        %960 = vmatpush1.bf16.msra.mxu0 %v928
        %961 = vmatprep.subr.bf16.mxu0 0
        %962 = vmatpush1.bf16.msra.mxu0 %v927
        %963 = vmatprep.subr.bf16.mxu0 0
        %964 = vmatpush2.bf16.msra.mxu0 0
        %965 = vmatprep.subr.bf16.mxu0 0
        %966 = vmatpush2.bf16.msra.mxu0 0
        %967 = vmatprep.subr.bf16.mxu0 0
        %968 = vmatpush2.bf16.msra.mxu0 0
        %969 = vmatprep.subr.bf16.mxu0 0
        %970 = vmatpush2.bf16.msra.mxu0 0
        %971 = vmatprep.subr.bf16.mxu0 0
        %972 = vmatpush2.bf16.msra.mxu0 0
        %973 = vmatprep.subr.bf16.mxu0 0
        %974 = vmatpush2.bf16.msra.mxu0 0
        %975 = vmatprep.subr.bf16.mxu0 0
        %976 = vmatpush2.bf16.msra.mxu0 0
        %977 = vmatprep.subr.bf16.mxu0 0
        %978 = vmatpush2.bf16.msra.mxu0 0
        %979 = vmatprep.mubr.bf16.mxu0 0
        %980 = vmatmul.mubr.bf16.gmra.mxu0 %v936
        %v981 = vpop.f32.mrf.mxu0
        %v982 = vadd.f32 0.0, %v981
        %v983 = vpop.f32.mrf.mxu0
        %v984 = vpop.f32.mrf.mxu0
        %v985 = vadd.f32 0.0, %v984
        %v986 = vpop.f32.mrf.mxu0
        %987 = vmatprep.mubr.bf16.mxu0 0
        %988 = vmatmul.mubr.bf16.gmra.mxu0 %v939
        %v989 = vpop.f32.mrf.mxu0
        %v990 = vadd.f32 0.0, %v989
        %v991 = vpop.f32.mrf.mxu0
        %v992 = vpop.f32.mrf.mxu0
        %v993 = vadd.f32 0.0, %v992
        %v994 = vpop.f32.mrf.mxu0
        %995 = vmatprep.mubr.bf16.mxu0 0
        %996 = vmatmul.mubr.bf16.gmra.mxu0 %v942
        %v997 = vpop.f32.mrf.mxu0
        %v998 = vadd.f32 0.0, %v997
        %v999 = vpop.f32.mrf.mxu0
        %v1000 = vpop.f32.mrf.mxu0
        %v1001 = vadd.f32 0.0, %v1000
        %v1002 = vpop.f32.mrf.mxu0
        %1003 = vmatprep.mubr.bf16.mxu0 0
        %1004 = vmatmul.mubr.bf16.gmra.mxu0 %v945
        %v1005 = vpop.f32.mrf.mxu0
        %v1006 = vadd.f32 0.0, %v1005
        %v1007 = vpop.f32.mrf.mxu0
        %v1008 = vpop.f32.mrf.mxu0
        %v1009 = vadd.f32 0.0, %v1008
        %v1010 = vpop.f32.mrf.mxu0
        %1011 = vdwg.mxu0
        %v1012 = vld [vmem:[%s3] sm:$0x1]
        %v1014 = vlaneseq
        %v1015 = vshrl.u32 %v1014, 7
        %v1016 = vsub.s32 0, %v1015
        %v1017 = vrot.slane %v1012, %v1016
        %v1019 = vmul.f32 %v982, %v1017
        %v1020 = vmul.f32 %v985, %v1017
        %v1021 = vmul.f32 %v990, %v1017
        %v1022 = vmul.f32 %v993, %v1017
        %v1023 = vmul.f32 %v998, %v1017
        %v1024 = vmul.f32 %v1001, %v1017
        %v1025 = vmul.f32 %v1006, %v1017
        %v1026 = vmul.f32 %v1009, %v1017
        %v1027 = vld [vmem:[%s4] sm:$0x1]
        %v1029 = vlaneseq
        %v1030 = vshrl.u32 %v1029, 7
        %v1031 = vsub.s32 0, %v1030
        %v1032 = vrot.slane %v1027, %v1031
        %v1034 = vadd.f32 %v1019, %v1032
        %v1035 = vadd.f32 %v1020, %v1032
        %v1036 = vadd.f32 %v1021, %v1032
        %v1037 = vadd.f32 %v1022, %v1032
        %v1038 = vadd.f32 %v1023, %v1032
        %v1039 = vadd.f32 %v1024, %v1032
        %v1040 = vadd.f32 %v1025, %v1032
        %v1041 = vadd.f32 %v1026, %v1032
        %v1042 = vld [vmem:[%s275] sm:$0xff]
        %v1043 = vld [vmem:[%s275 + $0x8] sm:$0xff]
        %v1044 = vld [vmem:[%s275 + $0x10] sm:$0xff]
        %v1045 = vld [vmem:[%s275 + $0x18] sm:$0xff]
        %v1046 = vld [vmem:[%s275 + $0x20] sm:$0xff]
        %v1047 = vld [vmem:[%s275 + $0x28] sm:$0xff]
        %v1048 = vld [vmem:[%s275 + $0x30] sm:$0xff]
        %v1049 = vld [vmem:[%s275 + $0x38] sm:$0xff]
        %v1050 = vadd.f32 %v1034, %v1042
        %v1051 = vadd.f32 %v1035, %v1043
        %v1052 = vadd.f32 %v1036, %v1044
        %v1053 = vadd.f32 %v1037, %v1045
        %v1054 = vadd.f32 %v1038, %v1046
        %v1055 = vadd.f32 %v1039, %v1047
        %v1056 = vadd.f32 %v1040, %v1048
        %v1057 = vadd.f32 %v1041, %v1049
        %v1058 = vmax.f32 %v1050, 0.0
        %v1059 = vmax.f32 %v1051, 0.0
        %v1060 = vmax.f32 %v1052, 0.0
        %v1061 = vmax.f32 %v1053, 0.0
        %v1062 = vmax.f32 %v1054, 0.0
        %v1063 = vmax.f32 %v1055, 0.0
        %v1064 = vmax.f32 %v1056, 0.0
        %v1065 = vmax.f32 %v1057, 0.0
        %1066 = vst.msk [vmem:[%s263] sm:$0xff] %vm691, %v1058
        %1067 = vst.msk [vmem:[%s263 + $0x8] sm:$0xff] %vm691, %v1059
        %1068 = vst.msk [vmem:[%s263 + $0x10] sm:$0xff] %vm691, %v1060
        %1069 = vst.msk [vmem:[%s263 + $0x18] sm:$0xff] %vm691, %v1061
        %1070 = vst.msk [vmem:[%s263 + $0x20] sm:$0xff] %vm691, %v1062
        %1071 = vst.msk [vmem:[%s263 + $0x28] sm:$0xff] %vm691, %v1063
        %1072 = vst.msk [vmem:[%s263 + $0x30] sm:$0xff] %vm691, %v1064
        %1073 = vst.msk [vmem:[%s263 + $0x38] sm:$0xff] %vm691, %v1065
        %s1074 = sand.u32 %s164, 1
        %s1075 = scalar_lea.sflag [#allocation3], %s1074
        %s1076 = sand.u32 %s164, 1
        %s1077 = smul.addr %s1076, 64
        %s1078 = scalar_lea.vmem [#allocation2], %s1077
        // Predicated region
        $region45: #{low_rank_block_forward.5} parent=43 // pred_check
          %p1079 = pneg %p174
        $region46: #{low_rank_block_forward.5} parent=43 // pred_check_branch
          %1081 = sbr.rel (%p1079) target = $region48
        $region47: #{low_rank_block_forward.5} parent=43 // pred_region
          %s1082 = smul.u32 8, %s20
          %s1084 = ssub.s32 1024, 1024
          %1085 = vsyncadd %s1075, %s1084
          %s1086 = smul.addr %s1082, 128
          %s1087 = scalar_lea.hbm %s6, %s1086
          %s1088 = sshll.u32 %s1078, 4
          %s1089 = int_to_ptr.vmem [resolvable:$true] %s1088
          %1094 = dma.vmem_to_hbm [thread:$0]  %s1089, 1024, %s1087, %s1075, 128, 128, 8
        $region48: #{low_rank_block_forward.5} parent=43 // pred_fallthru
          _
      $region44: #{low_rank_block_forward.5} parent=5 // pred_fallthru
        _
      %p1095 = scmp.le.s32.totalorder 2, %s15
      // Predicated region
      $region49: #{low_rank_block_forward.5} parent=5 // pred_check
        %p1096 = pneg %p1095
      $region50: #{low_rank_block_forward.5} parent=5 // pred_check_branch
        %1098 = sbr.rel (%p1096) target = $region52
      $region51: #{low_rank_block_forward.5} parent=5 // pred_region
        %s1099 = ssub.s32 %s15, 2
        // Predicated region
        $region53: #{low_rank_block_forward.5} parent=51 // pred_check
          %p1100 = pneg %p180
        $region54: #{low_rank_block_forward.5} parent=51 // pred_check_branch
          %1102 = sbr.rel (%p1100) target = $region56
        $region55: #{low_rank_block_forward.5} parent=51 // pred_region
          %s1103 = sand.u32 %s165, 1
          %s1104 = scalar_lea.sflag [#allocation3], %s1103
          %s1105 = sand.u32 %s165, 1
          %s1106 = smul.addr %s1105, 64
          %s1107 = scalar_lea.vmem [#allocation2], %s1106
          %1108 = dma.done %s1104, 1024
        $region56: #{low_rank_block_forward.5} parent=51 // pred_fallthru
          _
      $region52: #{low_rank_block_forward.5} parent=5 // pred_fallthru
        _
    $region6: #{low_rank_block_forward.5} parent=1 // loop_footer
      %s19 = sadd.s32 1, %s15
    $region7: #{low_rank_block_forward.5} parent=1 // loop_footer_branch
      %14 = sbr.rel target = $region3
    $region8: #{low_rank_block_forward.5} parent=1 // loop_exit
      _
    %1109 = vsyncpa [#allocation3], 1
    %s1110 = scalar_lea.sflag [#allocation3], 1
    %1111 = vsyncpa %s1110, 1

</llo_original>
